<compile_context>
chip_gen: v6e
topology: v6e:2x2x1
jax: 0.10.0
libtpu: 0.0.40
codegen_flags: <defaults>
</compile_context>

<pallas_src>
import jax
import jax.numpy as jnp
from jax.experimental import pallas as pl
from jax.experimental.pallas import tpu as pltpu


def _swish_f32(h):
    # x * sigmoid(x). exp -> EUP; approx reciprocal -> EUP vrcp (co-issues with
    # MXU/VPU work), instead of an exact VALU divide / Newton sequence.
    return h * pl.reciprocal(1.0 + jnp.exp(-h), approx=True)


def _mlp_kernel(x_ref, w0_ref, w1_ref, w2_ref, w3_ref, o_ref):
    # One batch tile flows through the entire network; weights are VMEM-resident.
    # All MXU inputs are cast to the weight dtype (bf16); accumulate in f32.
    h = jnp.dot(x_ref[...].astype(w0_ref.dtype), w0_ref[...],
                preferred_element_type=jnp.float32)
    h = _swish_f32(h)
    h = jnp.dot(h.astype(w1_ref.dtype), w1_ref[...],
                preferred_element_type=jnp.float32)
    h = _swish_f32(h)
    h = jnp.dot(h.astype(w2_ref.dtype), w2_ref[...],
                preferred_element_type=jnp.float32)
    h = _swish_f32(h)
    y = jnp.dot(h.astype(w3_ref.dtype), w3_ref[...],
                preferred_element_type=jnp.float32)
    o_ref[...] = y.astype(o_ref.dtype)


def _choose_tm(B, requested=None, *, min_tiles=1):
    """Batch tile: multiple of 16 (bf16 packs 16 sublanes/vreg), <= 256 to bound
    the tm x ch f32 intermediate, and dividing B when possible (no pad/slice)."""
    if requested is None:
        requested = max(16, pl.cdiv(B, max(int(min_tiles), 1)))
    tm = max(16, min(requested, B, 256))
    tm -= tm % 16
    t = tm
    while t >= 16:                      # prefer an exact divisor of B
        if B % t == 0:
            return t
        t -= 16
    return tm                           # fall back: wrapper pads the batch


def mlp_forward(x, weights, *, tm=None, min_batch_tiles=1,
                out_dtype=jnp.float32, single_buffer_weights=True):
    """Fused MLP forward.

    Args:
      x:       [B, in_dim] input.
      weights: (w0, w1, w2, w3), each stored as (cin, cout) so the kernel
               computes x @ W (== torch's x @ W.T with W:(cout,cin)).
               Pass them in bf16 for full MXU rate; f32 also works.
      tm:      batch tile (auto if None).
      min_batch_tiles: lower bound on grid steps (2 keeps both v7x cores busy).
    Returns:
      [B, out_dim] output in `out_dtype`.
    """
    w0, w1, w2, w3 = weights
    B, in_dim = x.shape
    ch = w0.shape[1]
    out_dim = w3.shape[1]

    tm = _choose_tm(B, tm, min_tiles=min_batch_tiles)
    b_pad = pl.cdiv(B, tm) * tm
    x_p = x if b_pad == B else jnp.pad(x, ((0, b_pad - B), (0, 0)))
    grid = (b_pad // tm,)

    # Weights: constant index_map => never re-fetched; single-buffer them.
    def w_spec(shape):
        if single_buffer_weights:
            return pl.BlockSpec(shape, lambda i: (0, 0),
                                pipeline_mode=pl.Buffered(buffer_count=1))
        return pl.BlockSpec(shape, lambda i: (0, 0))

    # Explicit VMEM budget from the actual footprint (+ headroom), so the
    # default scoped limit (16/32 MiB) never constrains the tile choice.
    weight_bufs = 1 if single_buffer_weights else 2
    w_bytes = sum(int(w.size) * w.dtype.itemsize for w in weights) * weight_bufs
    io_bytes = (2 * tm * in_dim * x.dtype.itemsize
                + 2 * tm * out_dim * jnp.dtype(out_dtype).itemsize)
    act_bytes = 4 * tm * ch * 4            # f32 intermediates between matmuls
    vmem_limit = int(min(2 * (w_bytes + io_bytes + act_bytes) + (16 << 20),
                         64 << 20))

    flops = 2 * b_pad * (in_dim * ch + 2 * ch * ch + ch * out_dim)
    transcendentals = 3 * b_pad * ch       # one exp per hidden activation
    bytes_accessed = (x_p.size * x_p.dtype.itemsize
                      + sum(int(w.size) * w.dtype.itemsize for w in weights)
                      + b_pad * out_dim * jnp.dtype(out_dtype).itemsize)

    out = pl.pallas_call(
        _mlp_kernel,
        out_shape=jax.ShapeDtypeStruct((b_pad, out_dim), out_dtype),
        grid=grid,
        in_specs=[
            pl.BlockSpec((tm, in_dim), lambda i: (i, 0)),  # x: streamed per tile
            w_spec((in_dim, ch)),                          # weights: resident
            w_spec((ch, ch)),
            w_spec((ch, ch)),
            w_spec((ch, out_dim)),
        ],
        out_specs=pl.BlockSpec((tm, out_dim), lambda i: (i, 0)),
        compiler_params=pltpu.CompilerParams(
            dimension_semantics=("parallel",),
            vmem_limit_bytes=vmem_limit,
        ),
        cost_estimate=pl.CostEstimate(
            flops=flops,
            transcendentals=transcendentals,
            bytes_accessed=bytes_accessed,
        ),
    )(x_p, w0, w1, w2, w3)

    return out[:B] if b_pad != B else out


if __name__ == "__main__":
    key = jax.random.PRNGKey(0)
    k_x, k0, k1, k2, k3 = jax.random.split(key, 5)

    # Small shapes consistent with MLP(in_dim, out_dim, ch, num_nonlins=3).
    # Hidden width is a multiple of 128 (lane-dense / MXU-aligned tiles).
    B, in_dim, ch, out_dim = 128, 16, 256, 8

    x = jax.random.normal(k_x, (B, in_dim), dtype=jnp.float32)

    def init_w(k, cin, cout):
        # nn.Linear default init scale U(-1/sqrt(cin), 1/sqrt(cin)),
        # stored as (cin, cout) so the forward is x @ W.
        bound = 1.0 / (cin ** 0.5)
        return jax.random.uniform(k, (cin, cout), jnp.float32, -bound, bound)

    w_f32 = (
        init_w(k0, in_dim, ch),
        init_w(k1, ch, ch),
        init_w(k2, ch, ch),
        init_w(k3, ch, out_dim),
    )
    # bf16 weights: MXU-native rate, half the weight VMEM/HBM bytes.
    weights = tuple(w.astype(jnp.bfloat16) for w in w_f32)

    # v7x has 2 TensorCores per chip: give the 'parallel' batch axis >= 2 steps
    # there; elsewhere the grid is a serial loop so a single full tile is best.
    try:
        kind = jax.devices()[0].device_kind.lower()
    except Exception:  # pragma: no cover
        kind = ""
    min_tiles = 2 if "7" in kind else 1

    try:
        y = jax.block_until_ready(
            mlp_forward(x, weights, min_batch_tiles=min_tiles))
    except Exception:
        # Fallback for jax versions without pl.Buffered single-buffering.
        y = jax.block_until_ready(
            mlp_forward(x, weights, min_batch_tiles=min_tiles,
                        single_buffer_weights=False))

    # Pure-JAX reference (same bf16 weights, f32 math).
    def swish(h):
        return h * jax.nn.sigmoid(h)

    wr = tuple(w.astype(jnp.float32) for w in weights)
    h = swish(x @ wr[0])
    h = swish(h @ wr[1])
    h = swish(h @ wr[2])
    y_ref = h @ wr[3]

    assert y.shape == (B, out_dim)
    assert y.dtype == jnp.float32
    max_err = float(jnp.max(jnp.abs(y - y_ref)))
    assert jnp.allclose(y, y_ref, atol=3e-2, rtol=3e-2), max_err

    print("KERNEL_OK")
</pallas_src>

<mosaic_0001>
module attributes {stable_mosaic.version = 11 : i64} {
  func.func @_mlp_kernel(%arg0: i32, %arg1: memref<128x16xf32, #tpu.memory_space<vmem>>, %arg2: memref<16x256xbf16, #tpu.memory_space<vmem>>, %arg3: memref<256x256xbf16, #tpu.memory_space<vmem>>, %arg4: memref<256x256xbf16, #tpu.memory_space<vmem>>, %arg5: memref<256x8xbf16, #tpu.memory_space<vmem>>, %arg6: memref<128x8xf32, #tpu.memory_space<vmem>>) attributes {dimension_semantics = [#tpu.dimension_semantics<parallel>], iteration_bounds = array<i64: 1>, scalar_prefetch = 0 : i64, scratch_operands = 0 : i64, tpu.core_type = #tpu.core_type<tc>, window_params = [{transform_indices = @transform_0, window_bounds = array<i64: 128, 16>}, {pipeline_mode = #tpu.pipeline_mode<synchronous>, transform_indices = @transform_1, window_bounds = array<i64: 16, 256>}, {pipeline_mode = #tpu.pipeline_mode<synchronous>, transform_indices = @transform_2, window_bounds = array<i64: 256, 256>}, {pipeline_mode = #tpu.pipeline_mode<synchronous>, transform_indices = @transform_3, window_bounds = array<i64: 256, 256>}, {pipeline_mode = #tpu.pipeline_mode<synchronous>, transform_indices = @transform_4, window_bounds = array<i64: 256, 8>}, {transform_indices = @transform_5, window_bounds = array<i64: 128, 8>}]} {
    %c0 = arith.constant 0 : index
    %c0_0 = arith.constant 0 : index
    %0 = vector.load %arg1[%c0, %c0_0] : memref<128x16xf32, #tpu.memory_space<vmem>>, vector<128x16xf32>
    %1 = arith.truncf %0 : vector<128x16xf32> to vector<128x16xbf16>
    %c0_1 = arith.constant 0 : index
    %c0_2 = arith.constant 0 : index
    %2 = vector.load %arg2[%c0_1, %c0_2] : memref<16x256xbf16, #tpu.memory_space<vmem>>, vector<16x256xbf16>
    %cst = arith.constant dense<0.000000e+00> : vector<128x256xf32>
    %3 = tpu.matmul %1, %2, %cst {dimension_numbers = #tpu.dot_dimension_numbers<[1], [0], [0], [1], [0, 0, 1, 1], [], []>} : vector<128x16xbf16>, vector<16x256xbf16>, vector<128x256xf32> -> vector<128x256xf32>
    %cst_3 = arith.constant 0.000000e+00 : f32
    %4 = vector.broadcast %cst_3 : f32 to vector<128x256xf32>
    %5 = arith.subf %4, %3 : vector<128x256xf32>
    %6 = math.exp %5 : vector<128x256xf32>
    %cst_4 = arith.constant 1.000000e+00 : f32
    %7 = vector.broadcast %cst_4 : f32 to vector<128x256xf32>
    %8 = arith.addf %7, %6 : vector<128x256xf32>
    %9 = tpu.reciprocal %8 {approx = true} : vector<128x256xf32> -> vector<128x256xf32>
    %10 = arith.mulf %3, %9 : vector<128x256xf32>
    %11 = arith.truncf %10 : vector<128x256xf32> to vector<128x256xbf16>
    %c0_5 = arith.constant 0 : index
    %c0_6 = arith.constant 0 : index
    %12 = vector.load %arg3[%c0_5, %c0_6] : memref<256x256xbf16, #tpu.memory_space<vmem>>, vector<256x256xbf16>
    %cst_7 = arith.constant dense<0.000000e+00> : vector<128x256xf32>
    %13 = tpu.matmul %11, %12, %cst_7 {dimension_numbers = #tpu.dot_dimension_numbers<[1], [0], [0], [1], [0, 0, 1, 1], [], []>} : vector<128x256xbf16>, vector<256x256xbf16>, vector<128x256xf32> -> vector<128x256xf32>
    %cst_8 = arith.constant 0.000000e+00 : f32
    %14 = vector.broadcast %cst_8 : f32 to vector<128x256xf32>
    %15 = arith.subf %14, %13 : vector<128x256xf32>
    %16 = math.exp %15 : vector<128x256xf32>
    %cst_9 = arith.constant 1.000000e+00 : f32
    %17 = vector.broadcast %cst_9 : f32 to vector<128x256xf32>
    %18 = arith.addf %17, %16 : vector<128x256xf32>
    %19 = tpu.reciprocal %18 {approx = true} : vector<128x256xf32> -> vector<128x256xf32>
    %20 = arith.mulf %13, %19 : vector<128x256xf32>
    %21 = arith.truncf %20 : vector<128x256xf32> to vector<128x256xbf16>
    %c0_10 = arith.constant 0 : index
    %c0_11 = arith.constant 0 : index
    %22 = vector.load %arg4[%c0_10, %c0_11] : memref<256x256xbf16, #tpu.memory_space<vmem>>, vector<256x256xbf16>
    %cst_12 = arith.constant dense<0.000000e+00> : vector<128x256xf32>
    %23 = tpu.matmul %21, %22, %cst_12 {dimension_numbers = #tpu.dot_dimension_numbers<[1], [0], [0], [1], [0, 0, 1, 1], [], []>} : vector<128x256xbf16>, vector<256x256xbf16>, vector<128x256xf32> -> vector<128x256xf32>
    %cst_13 = arith.constant 0.000000e+00 : f32
    %24 = vector.broadcast %cst_13 : f32 to vector<128x256xf32>
    %25 = arith.subf %24, %23 : vector<128x256xf32>
    %26 = math.exp %25 : vector<128x256xf32>
    %cst_14 = arith.constant 1.000000e+00 : f32
    %27 = vector.broadcast %cst_14 : f32 to vector<128x256xf32>
    %28 = arith.addf %27, %26 : vector<128x256xf32>
    %29 = tpu.reciprocal %28 {approx = true} : vector<128x256xf32> -> vector<128x256xf32>
    %30 = arith.mulf %23, %29 : vector<128x256xf32>
    %31 = arith.truncf %30 : vector<128x256xf32> to vector<128x256xbf16>
    %c0_15 = arith.constant 0 : index
    %c0_16 = arith.constant 0 : index
    %32 = vector.load %arg5[%c0_15, %c0_16] : memref<256x8xbf16, #tpu.memory_space<vmem>>, vector<256x8xbf16>
    %cst_17 = arith.constant dense<0.000000e+00> : vector<128x8xf32>
    %33 = tpu.matmul %31, %32, %cst_17 {dimension_numbers = #tpu.dot_dimension_numbers<[1], [0], [0], [1], [0, 0, 1, 1], [], []>} : vector<128x256xbf16>, vector<256x8xbf16>, vector<128x8xf32> -> vector<128x8xf32>
    %c0_18 = arith.constant 0 : index
    %c0_19 = arith.constant 0 : index
    %34 = vector.load %arg6[%c0_18, %c0_19] : memref<128x8xf32, #tpu.memory_space<vmem>>, vector<128x8xf32>
    tpu.vector_store %arg6[%c0_18, %c0_19], %33 {strides = array<i32>} : memref<128x8xf32, #tpu.memory_space<vmem>>, vector<128x8xf32>,
    return
  }
  func.func @transform_0(%arg0: i32) -> (i32, i32) {
    %c0_i32 = arith.constant 0 : i32
    %c0_i32_0 = arith.constant 0 : i32
    return %arg0, %c0_i32 : i32, i32
  }
  func.func @transform_1(%arg0: i32) -> (i32, i32) {
    %c0_i32 = arith.constant 0 : i32
    %c0_i32_0 = arith.constant 0 : i32
    %c0_i32_1 = arith.constant 0 : i32
    return %c0_i32, %c0_i32_0 : i32, i32
  }
  func.func @transform_2(%arg0: i32) -> (i32, i32) {
    %c0_i32 = arith.constant 0 : i32
    %c0_i32_0 = arith.constant 0 : i32
    %c0_i32_1 = arith.constant 0 : i32
    return %c0_i32, %c0_i32_0 : i32, i32
  }
  func.func @transform_3(%arg0: i32) -> (i32, i32) {
    %c0_i32 = arith.constant 0 : i32
    %c0_i32_0 = arith.constant 0 : i32
    %c0_i32_1 = arith.constant 0 : i32
    return %c0_i32, %c0_i32_0 : i32, i32
  }
  func.func @transform_4(%arg0: i32) -> (i32, i32) {
    %c0_i32 = arith.constant 0 : i32
    %c0_i32_0 = arith.constant 0 : i32
    %c0_i32_1 = arith.constant 0 : i32
    return %c0_i32, %c0_i32_0 : i32, i32
  }
  func.func @transform_5(%arg0: i32) -> (i32, i32) {
    %c0_i32 = arith.constant 0 : i32
    %c0_i32_0 = arith.constant 0 : i32
    return %arg0, %c0_i32 : i32, i32
  }
}

module attributes {stable_mosaic.version = 11 : i64} {
  func.func @_mlp_kernel(%arg0: i32, %arg1: memref<128x16xf32, #tpu.memory_space<vmem>>, %arg2: memref<16x256xbf16, #tpu.memory_space<vmem>>, %arg3: memref<256x256xbf16, #tpu.memory_space<vmem>>, %arg4: memref<256x256xbf16, #tpu.memory_space<vmem>>, %arg5: memref<256x8xbf16, #tpu.memory_space<vmem>>, %arg6: memref<128x8xf32, #tpu.memory_space<vmem>>) attributes {dimension_semantics = [#tpu.dimension_semantics<parallel>], iteration_bounds = array<i64: 1>, scalar_prefetch = 0 : i64, scratch_operands = 0 : i64, tpu.core_type = #tpu.core_type<tc>, window_params = [{transform_indices = @transform_0, window_bounds = array<i64: 128, 16>}, {pipeline_mode = #tpu.pipeline_mode<synchronous>, transform_indices = @transform_1, window_bounds = array<i64: 16, 256>}, {pipeline_mode = #tpu.pipeline_mode<synchronous>, transform_indices = @transform_2, window_bounds = array<i64: 256, 256>}, {pipeline_mode = #tpu.pipeline_mode<synchronous>, transform_indices = @transform_3, window_bounds = array<i64: 256, 256>}, {pipeline_mode = #tpu.pipeline_mode<synchronous>, transform_indices = @transform_4, window_bounds = array<i64: 256, 8>}, {transform_indices = @transform_5, window_bounds = array<i64: 128, 8>}]} {
    %c0 = arith.constant 0 : index
    %c0_0 = arith.constant 0 : index
    %0 = vector.load %arg1[%c0, %c0_0] : memref<128x16xf32, #tpu.memory_space<vmem>>, vector<128x16xf32>
    %1 = arith.truncf %0 : vector<128x16xf32> to vector<128x16xbf16>
    %c0_1 = arith.constant 0 : index
    %c0_2 = arith.constant 0 : index
    %2 = vector.load %arg2[%c0_1, %c0_2] : memref<16x256xbf16, #tpu.memory_space<vmem>>, vector<16x256xbf16>
    %cst = arith.constant dense<0.000000e+00> : vector<128x256xf32>
    %3 = tpu.matmul %1, %2, %cst {dimension_numbers = #tpu.dot_dimension_numbers<[1], [0], [0], [1], [0, 0, 1, 1], [], []>} : vector<128x16xbf16>, vector<16x256xbf16>, vector<128x256xf32> -> vector<128x256xf32>
    %cst_3 = arith.constant 0.000000e+00 : f32
    %4 = vector.broadcast %cst_3 : f32 to vector<128x256xf32>
    %5 = arith.subf %4, %3 : vector<128x256xf32>
    %6 = math.exp %5 : vector<128x256xf32>
    %cst_4 = arith.constant 1.000000e+00 : f32
    %7 = vector.broadcast %cst_4 : f32 to vector<128x256xf32>
    %8 = arith.addf %7, %6 : vector<128x256xf32>
    %9 = tpu.reciprocal %8 {approx = true} : vector<128x256xf32> -> vector<128x256xf32>
    %10 = arith.mulf %3, %9 : vector<128x256xf32>
    %11 = arith.truncf %10 : vector<128x256xf32> to vector<128x256xbf16>
    %c0_5 = arith.constant 0 : index
    %c0_6 = arith.constant 0 : index
    %12 = vector.load %arg3[%c0_5, %c0_6] : memref<256x256xbf16, #tpu.memory_space<vmem>>, vector<256x256xbf16>
    %cst_7 = arith.constant dense<0.000000e+00> : vector<128x256xf32>
    %13 = tpu.matmul %11, %12, %cst_7 {dimension_numbers = #tpu.dot_dimension_numbers<[1], [0], [0], [1], [0, 0, 1, 1], [], []>} : vector<128x256xbf16>, vector<256x256xbf16>, vector<128x256xf32> -> vector<128x256xf32>
    %cst_8 = arith.constant 0.000000e+00 : f32
    %14 = vector.broadcast %cst_8 : f32 to vector<128x256xf32>
    %15 = arith.subf %14, %13 : vector<128x256xf32>
    %16 = math.exp %15 : vector<128x256xf32>
    %cst_9 = arith.constant 1.000000e+00 : f32
    %17 = vector.broadcast %cst_9 : f32 to vector<128x256xf32>
    %18 = arith.addf %17, %16 : vector<128x256xf32>
    %19 = tpu.reciprocal %18 {approx = true} : vector<128x256xf32> -> vector<128x256xf32>
    %20 = arith.mulf %13, %19 : vector<128x256xf32>
    %21 = arith.truncf %20 : vector<128x256xf32> to vector<128x256xbf16>
    %c0_10 = arith.constant 0 : index
    %c0_11 = arith.constant 0 : index
    %22 = vector.load %arg4[%c0_10, %c0_11] : memref<256x256xbf16, #tpu.memory_space<vmem>>, vector<256x256xbf16>
    %cst_12 = arith.constant dense<0.000000e+00> : vector<128x256xf32>
    %23 = tpu.matmul %21, %22, %cst_12 {dimension_numbers = #tpu.dot_dimension_numbers<[1], [0], [0], [1], [0, 0, 1, 1], [], []>} : vector<128x256xbf16>, vector<256x256xbf16>, vector<128x256xf32> -> vector<128x256xf32>
    %cst_13 = arith.constant 0.000000e+00 : f32
    %24 = vector.broadcast %cst_13 : f32 to vector<128x256xf32>
    %25 = arith.subf %24, %23 : vector<128x256xf32>
    %26 = math.exp %25 : vector<128x256xf32>
    %cst_14 = arith.constant 1.000000e+00 : f32
    %27 = vector.broadcast %cst_14 : f32 to vector<128x256xf32>
    %28 = arith.addf %27, %26 : vector<128x256xf32>
    %29 = tpu.reciprocal %28 {approx = true} : vector<128x256xf32> -> vector<128x256xf32>
    %30 = arith.mulf %23, %29 : vector<128x256xf32>
    %31 = arith.truncf %30 : vector<128x256xf32> to vector<128x256xbf16>
    %c0_15 = arith.constant 0 : index
    %c0_16 = arith.constant 0 : index
    %32 = vector.load %arg5[%c0_15, %c0_16] : memref<256x8xbf16, #tpu.memory_space<vmem>>, vector<256x8xbf16>
    %cst_17 = arith.constant dense<0.000000e+00> : vector<128x8xf32>
    %33 = tpu.matmul %31, %32, %cst_17 {dimension_numbers = #tpu.dot_dimension_numbers<[1], [0], [0], [1], [0, 0, 1, 1], [], []>} : vector<128x256xbf16>, vector<256x8xbf16>, vector<128x8xf32> -> vector<128x8xf32>
    %c0_18 = arith.constant 0 : index
    %c0_19 = arith.constant 0 : index
    %34 = vector.load %arg6[%c0_18, %c0_19] : memref<128x8xf32, #tpu.memory_space<vmem>>, vector<128x8xf32>
    tpu.vector_store %arg6[%c0_18, %c0_19], %33 {strides = array<i32>} : memref<128x8xf32, #tpu.memory_space<vmem>>, vector<128x8xf32>,
    return
  }
  func.func @transform_0(%arg0: i32) -> (i32, i32) {
    %c0_i32 = arith.constant 0 : i32
    %c0_i32_0 = arith.constant 0 : i32
    return %arg0, %c0_i32 : i32, i32
  }
  func.func @transform_1(%arg0: i32) -> (i32, i32) {
    %c0_i32 = arith.constant 0 : i32
    %c0_i32_0 = arith.constant 0 : i32
    %c0_i32_1 = arith.constant 0 : i32
    return %c0_i32, %c0_i32_0 : i32, i32
  }
  func.func @transform_2(%arg0: i32) -> (i32, i32) {
    %c0_i32 = arith.constant 0 : i32
    %c0_i32_0 = arith.constant 0 : i32
    %c0_i32_1 = arith.constant 0 : i32
    return %c0_i32, %c0_i32_0 : i32, i32
  }
  func.func @transform_3(%arg0: i32) -> (i32, i32) {
    %c0_i32 = arith.constant 0 : i32
    %c0_i32_0 = arith.constant 0 : i32
    %c0_i32_1 = arith.constant 0 : i32
    return %c0_i32, %c0_i32_0 : i32, i32
  }
  func.func @transform_4(%arg0: i32) -> (i32, i32) {
    %c0_i32 = arith.constant 0 : i32
    %c0_i32_0 = arith.constant 0 : i32
    %c0_i32_1 = arith.constant 0 : i32
    return %c0_i32, %c0_i32_0 : i32, i32
  }
  func.func @transform_5(%arg0: i32) -> (i32, i32) {
    %c0_i32 = arith.constant 0 : i32
    %c0_i32_0 = arith.constant 0 : i32
    return %arg0, %c0_i32 : i32, i32
  }
}

</mosaic_0001>

<llo_original>
// kernel: tpu_custom_call.1
$region0: #{tpu_custom_call.1}
  #allocation0 [shape = 'u32[]', space=smem, size = 0x4, offset = 0x4, fixed_abs, tag = 'smem constant byte address 0x4 - core index']
  #allocation1 [shape = 'u32[144,128]{1,0:T(1,128)}', space=vmem, size = 0x12000, scoped, tag = 'internal scratch']
  %s0 = inlined_call_operand.vmem [shape: f32[128,16], index: 0, kind: input, shape index: {}]
  %s1 = inlined_call_operand.vmem [shape: bf16[16,256], index: 1, kind: input, shape index: {}]
  %s2 = inlined_call_operand.vmem [shape: bf16[256,256], index: 2, kind: input, shape index: {}]
  %s3 = inlined_call_operand.hbm [shape: bf16[256,256], index: 3, kind: input, shape index: {}]
  %s4 = inlined_call_operand.vmem [shape: bf16[256,8], index: 4, kind: input, shape index: {}]
  %s5 = inlined_call_operand.vmem [shape: f32[128,8], index: 5, kind: output, shape index: {}]
  %s6 = sld [smem:[#allocation0]]
  $region34: #{tpu_custom_call.1} parent=0
    _
  %s8 = ssub.s32 1, %s6
  %s9 = scalar_select 0, %s8, %s6
  $region1: #{tpu_custom_call.1} parent=0
    #allocation2 [shape = 'u8[131072]{0}', space=vmem, size = 0x20000, scoped, tag = 'input window, operand 3, single buffered']
    #allocation3 [shape = 's32[1]{0}', space=sflag, size = 0x4, scoped, tag = 'scoped memory for tpu_custom_call.1']
    %10 = vsyncpa [#allocation3], 0
    // Predicated region
    $region2: #{tpu_custom_call.1} parent=1 // pred_check
      _
    $region3: #{tpu_custom_call.1} parent=1 // pred_check_branch
      %12 = sbr.rel (0) target = $region5
    $region4: #{tpu_custom_call.1} parent=1 // pred_region
      _
    $region5: #{tpu_custom_call.1} parent=1 // pred_fallthru
      _
    // Predicated region
    $region6: #{tpu_custom_call.1} parent=1 // pred_check
      _
    $region7: #{tpu_custom_call.1} parent=1 // pred_check_branch
      %14 = sbr.rel (0) target = $region9
    $region8: #{tpu_custom_call.1} parent=1 // pred_region
      _
    $region9: #{tpu_custom_call.1} parent=1 // pred_fallthru
      _
    // Predicated region
    $region10: #{tpu_custom_call.1} parent=1 // pred_check
      _
    $region11: #{tpu_custom_call.1} parent=1 // pred_check_branch
      %16 = sbr.rel (0) target = $region13
    $region12: #{tpu_custom_call.1} parent=1 // pred_region
      _
    $region13: #{tpu_custom_call.1} parent=1 // pred_fallthru
      _
    // Predicated region
    $region14: #{tpu_custom_call.1} parent=1 // pred_check
      _
    $region15: #{tpu_custom_call.1} parent=1 // pred_check_branch
      %18 = sbr.rel (0) target = $region17
    $region16: #{tpu_custom_call.1} parent=1 // pred_region
      %s20 = ssub.s32 4096, 4096
      %21 = vsyncadd [#allocation3], %s20
      %s22 = sshll.u32 [#allocation2], 4
      %s23 = int_to_ptr.vmem [resolvable:$true] %s22
      %28 = dma.hbm_to_vmem [thread:$0]  %s3, 4096, %s23, [#allocation3], 128, 128, 8
    $region17: #{tpu_custom_call.1} parent=1 // pred_fallthru
      _
    // Predicated region
    $region18: #{tpu_custom_call.1} parent=1 // pred_check
      _
    $region19: #{tpu_custom_call.1} parent=1 // pred_check_branch
      %30 = sbr.rel (0) target = $region21
    $region20: #{tpu_custom_call.1} parent=1 // pred_region
      _
    $region21: #{tpu_custom_call.1} parent=1 // pred_fallthru
      _
    // Predicated region
    $region22: #{tpu_custom_call.1} parent=1 // pred_check
      _
    $region23: #{tpu_custom_call.1} parent=1 // pred_check_branch
      %32 = sbr.rel (0) target = $region25
    $region24: #{tpu_custom_call.1} parent=1 // pred_region
      %33 = dma.done [#allocation3], 4096
    $region25: #{tpu_custom_call.1} parent=1 // pred_fallthru
      _
    %v35 = vld [vmem:[%s0] sm:$0xff]
    %v36 = vld [vmem:[%s0 + $0x8] sm:$0xff]
    %v37 = vld [vmem:[%s0 + $0x10] sm:$0xff]
    %v38 = vld [vmem:[%s0 + $0x18] sm:$0xff]
    %v39 = vld [vmem:[%s0 + $0x20] sm:$0xff]
    %v40 = vld [vmem:[%s0 + $0x28] sm:$0xff]
    %v41 = vld [vmem:[%s0 + $0x30] sm:$0xff]
    %v42 = vld [vmem:[%s0 + $0x38] sm:$0xff]
    %v43 = vld [vmem:[%s0 + $0x40] sm:$0xff]
    %v44 = vld [vmem:[%s0 + $0x48] sm:$0xff]
    %v45 = vld [vmem:[%s0 + $0x50] sm:$0xff]
    %v46 = vld [vmem:[%s0 + $0x58] sm:$0xff]
    %v47 = vld [vmem:[%s0 + $0x60] sm:$0xff]
    %v48 = vld [vmem:[%s0 + $0x68] sm:$0xff]
    %v49 = vld [vmem:[%s0 + $0x70] sm:$0xff]
    %v50 = vld [vmem:[%s0 + $0x78] sm:$0xff]
    %v51 = vpack.c.bf16 %v36, %v35
    %v52 = vpack.c.bf16 %v38, %v37
    %v53 = vpack.c.bf16 %v40, %v39
    %v54 = vpack.c.bf16 %v42, %v41
    %v55 = vpack.c.bf16 %v44, %v43
    %v56 = vpack.c.bf16 %v46, %v45
    %v57 = vpack.c.bf16 %v48, %v47
    %v58 = vpack.c.bf16 %v50, %v49
    %v59 = vld [vmem:[%s1] sm:$0xff]
    %v60 = vld [vmem:[%s1 + $0x8] sm:$0xff]
    %v63 = vunpack.c.l.b16 %v59
    %v64 = vunpack.c.h.b16 %v59
    %v65 = vunpack.c.l.b16 %v60
    %v66 = vunpack.c.h.b16 %v60
    %v67 = vpack.c.b16 %v65, %v63
    %v68 = vpack.c.b16 %v66, %v64
    %vm71 = vcmask 130048
    %v73 = vsel %vm71, %v51, 0
    %v76 = vsel %vm71, %v52, 0
    %v79 = vsel %vm71, %v53, 0
    %v82 = vsel %vm71, %v54, 0
    %v85 = vsel %vm71, %v55, 0
    %v88 = vsel %vm71, %v56, 0
    %v91 = vsel %vm71, %v57, 0
    %v94 = vsel %vm71, %v58, 0
    %96 = vmatprep.subr.bf16.mxu0 0
    %97 = vmatpush1.bf16.msra.mxu0 0
    %98 = vmatprep.subr.bf16.mxu0 0
    %99 = vmatpush1.bf16.msra.mxu0 0
    %100 = vmatprep.subr.bf16.mxu0 0
    %101 = vmatpush1.bf16.msra.mxu0 0
    %102 = vmatprep.subr.bf16.mxu0 0
    %103 = vmatpush1.bf16.msra.mxu0 0
    %104 = vmatprep.subr.bf16.mxu0 0
    %105 = vmatpush1.bf16.msra.mxu0 0
    %106 = vmatprep.subr.bf16.mxu0 0
    %107 = vmatpush1.bf16.msra.mxu0 0
    %108 = vmatprep.subr.bf16.mxu0 0
    %109 = vmatpush1.bf16.msra.mxu0 0
    %110 = vmatprep.subr.bf16.mxu0 %v68
    %111 = vmatpush1.bf16.msra.mxu0 %v67
    %112 = vmatprep.subr.bf16.mxu0 0
    %113 = vmatpush2.bf16.msra.mxu0 0
    %114 = vmatprep.subr.bf16.mxu0 0
    %115 = vmatpush2.bf16.msra.mxu0 0
    %116 = vmatprep.subr.bf16.mxu0 0
    %117 = vmatpush2.bf16.msra.mxu0 0
    %118 = vmatprep.subr.bf16.mxu0 0
    %119 = vmatpush2.bf16.msra.mxu0 0
    %120 = vmatprep.subr.bf16.mxu0 0
    %121 = vmatpush2.bf16.msra.mxu0 0
    %122 = vmatprep.subr.bf16.mxu0 0
    %123 = vmatpush2.bf16.msra.mxu0 0
    %124 = vmatprep.subr.bf16.mxu0 0
    %125 = vmatpush2.bf16.msra.mxu0 0
    %126 = vmatprep.subr.bf16.mxu0 0
    %127 = vmatpush2.bf16.msra.mxu0 0
    %128 = vmatprep.mubr.bf16.mxu0 0
    %129 = vmatmul.mubr.bf16.gmra.mxu0 %v73
    %v130 = vpop.f32.mrf.mxu0
    %v131 = vadd.f32 0.0, %v130
    %v132 = vpop.f32.mrf.mxu0
    %v133 = vadd.f32 0.0, %v132
    %v134 = vpop.f32.mrf.mxu0
    %v135 = vadd.f32 0.0, %v134
    %v136 = vpop.f32.mrf.mxu0
    %v137 = vadd.f32 0.0, %v136
    %138 = vmatprep.mubr.bf16.mxu0 0
    %139 = vmatmul.mubr.bf16.gmra.mxu0 %v76
    %v140 = vpop.f32.mrf.mxu0
    %v141 = vadd.f32 0.0, %v140
    %v142 = vpop.f32.mrf.mxu0
    %v143 = vadd.f32 0.0, %v142
    %v144 = vpop.f32.mrf.mxu0
    %v145 = vadd.f32 0.0, %v144
    %v146 = vpop.f32.mrf.mxu0
    %v147 = vadd.f32 0.0, %v146
    %148 = vmatprep.mubr.bf16.mxu0 0
    %149 = vmatmul.mubr.bf16.gmra.mxu0 %v79
    %v150 = vpop.f32.mrf.mxu0
    %v151 = vadd.f32 0.0, %v150
    %v152 = vpop.f32.mrf.mxu0
    %v153 = vadd.f32 0.0, %v152
    %v154 = vpop.f32.mrf.mxu0
    %v155 = vadd.f32 0.0, %v154
    %v156 = vpop.f32.mrf.mxu0
    %v157 = vadd.f32 0.0, %v156
    %158 = vmatprep.mubr.bf16.mxu0 0
    %159 = vmatmul.mubr.bf16.gmra.mxu0 %v82
    %v160 = vpop.f32.mrf.mxu0
    %v161 = vadd.f32 0.0, %v160
    %v162 = vpop.f32.mrf.mxu0
    %v163 = vadd.f32 0.0, %v162
    %v164 = vpop.f32.mrf.mxu0
    %v165 = vadd.f32 0.0, %v164
    %v166 = vpop.f32.mrf.mxu0
    %v167 = vadd.f32 0.0, %v166
    %168 = vmatprep.mubr.bf16.mxu0 0
    %169 = vmatmul.mubr.bf16.gmra.mxu0 %v85
    %v170 = vpop.f32.mrf.mxu0
    %v171 = vadd.f32 0.0, %v170
    %v172 = vpop.f32.mrf.mxu0
    %v173 = vadd.f32 0.0, %v172
    %v174 = vpop.f32.mrf.mxu0
    %v175 = vadd.f32 0.0, %v174
    %v176 = vpop.f32.mrf.mxu0
    %v177 = vadd.f32 0.0, %v176
    %178 = vmatprep.mubr.bf16.mxu0 0
    %179 = vmatmul.mubr.bf16.gmra.mxu0 %v88
    %v180 = vpop.f32.mrf.mxu0
    %v181 = vadd.f32 0.0, %v180
    %v182 = vpop.f32.mrf.mxu0
    %v183 = vadd.f32 0.0, %v182
    %v184 = vpop.f32.mrf.mxu0
    %v185 = vadd.f32 0.0, %v184
    %v186 = vpop.f32.mrf.mxu0
    %v187 = vadd.f32 0.0, %v186
    %188 = vmatprep.mubr.bf16.mxu0 0
    %189 = vmatmul.mubr.bf16.gmra.mxu0 %v91
    %v190 = vpop.f32.mrf.mxu0
    %v191 = vadd.f32 0.0, %v190
    %v192 = vpop.f32.mrf.mxu0
    %v193 = vadd.f32 0.0, %v192
    %v194 = vpop.f32.mrf.mxu0
    %v195 = vadd.f32 0.0, %v194
    %v196 = vpop.f32.mrf.mxu0
    %v197 = vadd.f32 0.0, %v196
    %198 = vmatprep.mubr.bf16.mxu0 0
    %199 = vmatmul.mubr.bf16.gmra.mxu0 %v94
    %v200 = vpop.f32.mrf.mxu0
    %v201 = vadd.f32 0.0, %v200
    %v202 = vpop.f32.mrf.mxu0
    %v203 = vadd.f32 0.0, %v202
    %v204 = vpop.f32.mrf.mxu0
    %v205 = vadd.f32 0.0, %v204
    %v206 = vpop.f32.mrf.mxu0
    %v207 = vadd.f32 0.0, %v206
    %208 = vdwg.mxu0
    %v209 = vsub.f32 0.0, %v131
    %v210 = vsub.f32 0.0, %v133
    %v211 = vsub.f32 0.0, %v135
    %v212 = vsub.f32 0.0, %v137
    %v213 = vsub.f32 0.0, %v141
    %v214 = vsub.f32 0.0, %v143
    %v215 = vsub.f32 0.0, %v145
    %v216 = vsub.f32 0.0, %v147
    %v217 = vsub.f32 0.0, %v151
    %v218 = vsub.f32 0.0, %v153
    %v219 = vsub.f32 0.0, %v155
    %v220 = vsub.f32 0.0, %v157
    %v221 = vsub.f32 0.0, %v161
    %v222 = vsub.f32 0.0, %v163
    %v223 = vsub.f32 0.0, %v165
    %v224 = vsub.f32 0.0, %v167
    %v225 = vsub.f32 0.0, %v171
    %v226 = vsub.f32 0.0, %v173
    %v227 = vsub.f32 0.0, %v175
    %v228 = vsub.f32 0.0, %v177
    %v229 = vsub.f32 0.0, %v181
    %v230 = vsub.f32 0.0, %v183
    %v231 = vsub.f32 0.0, %v185
    %v232 = vsub.f32 0.0, %v187
    %v233 = vsub.f32 0.0, %v191
    %v234 = vsub.f32 0.0, %v193
    %v235 = vsub.f32 0.0, %v195
    %v236 = vsub.f32 0.0, %v197
    %v237 = vsub.f32 0.0, %v201
    %v238 = vsub.f32 0.0, %v203
    %v239 = vsub.f32 0.0, %v205
    %v240 = vsub.f32 0.0, %v207
    %v241 = vmul.f32 %v209, 1.442695
    %v242 = vpow.pop %v241
    %v243 = vmul.f32 %v210, 1.442695
    %v244 = vpow.pop %v243
    %v245 = vmul.f32 %v211, 1.442695
    %v246 = vpow.pop %v245
    %v247 = vmul.f32 %v212, 1.442695
    %v248 = vpow.pop %v247
    %v249 = vmul.f32 %v213, 1.442695
    %v250 = vpow.pop %v249
    %v251 = vmul.f32 %v214, 1.442695
    %v252 = vpow.pop %v251
    %v253 = vmul.f32 %v215, 1.442695
    %v254 = vpow.pop %v253
    %v255 = vmul.f32 %v216, 1.442695
    %v256 = vpow.pop %v255
    %v257 = vmul.f32 %v217, 1.442695
    %v258 = vpow.pop %v257
    %v259 = vmul.f32 %v218, 1.442695
    %v260 = vpow.pop %v259
    %v261 = vmul.f32 %v219, 1.442695
    %v262 = vpow.pop %v261
    %v263 = vmul.f32 %v220, 1.442695
    %v264 = vpow.pop %v263
    %v265 = vmul.f32 %v221, 1.442695
    %v266 = vpow.pop %v265
    %v267 = vmul.f32 %v222, 1.442695
    %v268 = vpow.pop %v267
    %v269 = vmul.f32 %v223, 1.442695
    %v270 = vpow.pop %v269
    %v271 = vmul.f32 %v224, 1.442695
    %v272 = vpow.pop %v271
    %v273 = vmul.f32 %v225, 1.442695
    %v274 = vpow.pop %v273
    %v275 = vmul.f32 %v226, 1.442695
    %v276 = vpow.pop %v275
    %v277 = vmul.f32 %v227, 1.442695
    %v278 = vpow.pop %v277
    %v279 = vmul.f32 %v228, 1.442695
    %v280 = vpow.pop %v279
    %v281 = vmul.f32 %v229, 1.442695
    %v282 = vpow.pop %v281
    %v283 = vmul.f32 %v230, 1.442695
    %v284 = vpow.pop %v283
    %v285 = vmul.f32 %v231, 1.442695
    %v286 = vpow.pop %v285
    %v287 = vmul.f32 %v232, 1.442695
    %v288 = vpow.pop %v287
    %v289 = vmul.f32 %v233, 1.442695
    %v290 = vpow.pop %v289
    %v291 = vmul.f32 %v234, 1.442695
    %v292 = vpow.pop %v291
    %v293 = vmul.f32 %v235, 1.442695
    %v294 = vpow.pop %v293
    %v295 = vmul.f32 %v236, 1.442695
    %v296 = vpow.pop %v295
    %v297 = vmul.f32 %v237, 1.442695
    %v298 = vpow.pop %v297
    %v299 = vmul.f32 %v238, 1.442695
    %v300 = vpow.pop %v299
    %v301 = vmul.f32 %v239, 1.442695
    %v302 = vpow.pop %v301
    %v303 = vmul.f32 %v240, 1.442695
    %v304 = vpow.pop %v303
    %v305 = vadd.f32 %v242, 1.0
    %v306 = vadd.f32 %v244, 1.0
    %v307 = vadd.f32 %v246, 1.0
    %v308 = vadd.f32 %v248, 1.0
    %v309 = vadd.f32 %v250, 1.0
    %v310 = vadd.f32 %v252, 1.0
    %v311 = vadd.f32 %v254, 1.0
    %v312 = vadd.f32 %v256, 1.0
    %v313 = vadd.f32 %v258, 1.0
    %v314 = vadd.f32 %v260, 1.0
    %v315 = vadd.f32 %v262, 1.0
    %v316 = vadd.f32 %v264, 1.0
    %v317 = vadd.f32 %v266, 1.0
    %v318 = vadd.f32 %v268, 1.0
    %v319 = vadd.f32 %v270, 1.0
    %v320 = vadd.f32 %v272, 1.0
    %v321 = vadd.f32 %v274, 1.0
    %v322 = vadd.f32 %v276, 1.0
    %v323 = vadd.f32 %v278, 1.0
    %v324 = vadd.f32 %v280, 1.0
    %v325 = vadd.f32 %v282, 1.0
    %v326 = vadd.f32 %v284, 1.0
    %v327 = vadd.f32 %v286, 1.0
    %v328 = vadd.f32 %v288, 1.0
    %v329 = vadd.f32 %v290, 1.0
    %v330 = vadd.f32 %v292, 1.0
    %v331 = vadd.f32 %v294, 1.0
    %v332 = vadd.f32 %v296, 1.0
    %v333 = vadd.f32 %v298, 1.0
    %v334 = vadd.f32 %v300, 1.0
    %v335 = vadd.f32 %v302, 1.0
    %v336 = vadd.f32 %v304, 1.0
    %v337 = vrcp.pop %v305
    %v338 = vrcp.pop %v306
    %v339 = vrcp.pop %v307
    %v340 = vrcp.pop %v308
    %v341 = vrcp.pop %v309
    %v342 = vrcp.pop %v310
    %v343 = vrcp.pop %v311
    %v344 = vrcp.pop %v312
    %v345 = vrcp.pop %v313
    %v346 = vrcp.pop %v314
    %v347 = vrcp.pop %v315
    %v348 = vrcp.pop %v316
    %v349 = vrcp.pop %v317
    %v350 = vrcp.pop %v318
    %v351 = vrcp.pop %v319
    %v352 = vrcp.pop %v320
    %v353 = vrcp.pop %v321
    %v354 = vrcp.pop %v322
    %v355 = vrcp.pop %v323
    %v356 = vrcp.pop %v324
    %v357 = vrcp.pop %v325
    %v358 = vrcp.pop %v326
    %v359 = vrcp.pop %v327
    %v360 = vrcp.pop %v328
    %v361 = vrcp.pop %v329
    %v362 = vrcp.pop %v330
    %v363 = vrcp.pop %v331
    %v364 = vrcp.pop %v332
    %v365 = vrcp.pop %v333
    %v366 = vrcp.pop %v334
    %v367 = vrcp.pop %v335
    %v368 = vrcp.pop %v336
    %v369 = vmul.f32 %v131, %v337
    %v370 = vmul.f32 %v133, %v338
    %v371 = vmul.f32 %v135, %v339
    %v372 = vmul.f32 %v137, %v340
    %v373 = vmul.f32 %v141, %v341
    %v374 = vmul.f32 %v143, %v342
    %v375 = vmul.f32 %v145, %v343
    %v376 = vmul.f32 %v147, %v344
    %v377 = vmul.f32 %v151, %v345
    %v378 = vmul.f32 %v153, %v346
    %v379 = vmul.f32 %v155, %v347
    %v380 = vmul.f32 %v157, %v348
    %v381 = vmul.f32 %v161, %v349
    %v382 = vmul.f32 %v163, %v350
    %v383 = vmul.f32 %v165, %v351
    %v384 = vmul.f32 %v167, %v352
    %v385 = vmul.f32 %v171, %v353
    %v386 = vmul.f32 %v173, %v354
    %v387 = vmul.f32 %v175, %v355
    %v388 = vmul.f32 %v177, %v356
    %v389 = vmul.f32 %v181, %v357
    %v390 = vmul.f32 %v183, %v358
    %v391 = vmul.f32 %v185, %v359
    %v392 = vmul.f32 %v187, %v360
    %v393 = vmul.f32 %v191, %v361
    %v394 = vmul.f32 %v193, %v362
    %v395 = vmul.f32 %v195, %v363
    %v396 = vmul.f32 %v197, %v364
    %v397 = vmul.f32 %v201, %v365
    %v398 = vmul.f32 %v203, %v366
    %v399 = vmul.f32 %v205, %v367
    %v400 = vmul.f32 %v207, %v368
    %v401 = vpack.c.bf16 %v371, %v369
    %v402 = vpack.c.bf16 %v372, %v370
    %v403 = vpack.c.bf16 %v375, %v373
    %v404 = vpack.c.bf16 %v376, %v374
    %v405 = vpack.c.bf16 %v379, %v377
    %v406 = vpack.c.bf16 %v380, %v378
    %v407 = vpack.c.bf16 %v383, %v381
    %v408 = vpack.c.bf16 %v384, %v382
    %v409 = vpack.c.bf16 %v387, %v385
    %v410 = vpack.c.bf16 %v388, %v386
    %v411 = vpack.c.bf16 %v391, %v389
    %v412 = vpack.c.bf16 %v392, %v390
    %v413 = vpack.c.bf16 %v395, %v393
    %v414 = vpack.c.bf16 %v396, %v394
    %v415 = vpack.c.bf16 %v399, %v397
    %v416 = vpack.c.bf16 %v400, %v398
    %v417 = vld [vmem:[%s2] sm:$0xff]
    %v418 = vld [vmem:[%s2 + $0x8] sm:$0xff]
    %v419 = vld [vmem:[%s2 + $0x10] sm:$0xff]
    %v420 = vld [vmem:[%s2 + $0x18] sm:$0xff]
    %v421 = vld [vmem:[%s2 + $0x20] sm:$0xff]
    %v422 = vld [vmem:[%s2 + $0x28] sm:$0xff]
    %v423 = vld [vmem:[%s2 + $0x30] sm:$0xff]
    %v424 = vld [vmem:[%s2 + $0x38] sm:$0xff]
    %v425 = vld [vmem:[%s2 + $0x40] sm:$0xff]
    %v426 = vld [vmem:[%s2 + $0x48] sm:$0xff]
    %v427 = vld [vmem:[%s2 + $0x50] sm:$0xff]
    %v428 = vld [vmem:[%s2 + $0x58] sm:$0xff]
    %v429 = vld [vmem:[%s2 + $0x60] sm:$0xff]
    %v430 = vld [vmem:[%s2 + $0x68] sm:$0xff]
    %v431 = vld [vmem:[%s2 + $0x70] sm:$0xff]
    %v432 = vld [vmem:[%s2 + $0x78] sm:$0xff]
    %v433 = vld [vmem:[%s2 + $0x80] sm:$0xff]
    %v434 = vld [vmem:[%s2 + $0x88] sm:$0xff]
    %v435 = vld [vmem:[%s2 + $0x90] sm:$0xff]
    %v436 = vld [vmem:[%s2 + $0x98] sm:$0xff]
    %v437 = vld [vmem:[%s2 + $0xa0] sm:$0xff]
    %v438 = vld [vmem:[%s2 + $0xa8] sm:$0xff]
    %v439 = vld [vmem:[%s2 + $0xb0] sm:$0xff]
    %v440 = vld [vmem:[%s2 + $0xb8] sm:$0xff]
    %v441 = vld [vmem:[%s2 + $0xc0] sm:$0xff]
    %v442 = vld [vmem:[%s2 + $0xc8] sm:$0xff]
    %v443 = vld [vmem:[%s2 + $0xd0] sm:$0xff]
    %v444 = vld [vmem:[%s2 + $0xd8] sm:$0xff]
    %v445 = vld [vmem:[%s2 + $0xe0] sm:$0xff]
    %v446 = vld [vmem:[%s2 + $0xe8] sm:$0xff]
    %v447 = vld [vmem:[%s2 + $0xf0] sm:$0xff]
    %v448 = vld [vmem:[%s2 + $0xf8] sm:$0xff]
    %v481 = vunpack.c.l.b16 %v417
    %v482 = vunpack.c.h.b16 %v417
    %v483 = vunpack.c.l.b16 %v418
    %v484 = vunpack.c.h.b16 %v418
    %v485 = vunpack.c.l.b16 %v419
    %v486 = vunpack.c.h.b16 %v419
    %v487 = vunpack.c.l.b16 %v420
    %v488 = vunpack.c.h.b16 %v420
    %v489 = vunpack.c.l.b16 %v421
    %v490 = vunpack.c.h.b16 %v421
    %v491 = vunpack.c.l.b16 %v422
    %v492 = vunpack.c.h.b16 %v422
    %v493 = vunpack.c.l.b16 %v423
    %v494 = vunpack.c.h.b16 %v423
    %v495 = vunpack.c.l.b16 %v424
    %v496 = vunpack.c.h.b16 %v424
    %v497 = vunpack.c.l.b16 %v425
    %v498 = vunpack.c.h.b16 %v425
    %v499 = vunpack.c.l.b16 %v426
    %v500 = vunpack.c.h.b16 %v426
    %v501 = vunpack.c.l.b16 %v427
    %v502 = vunpack.c.h.b16 %v427
    %v503 = vunpack.c.l.b16 %v428
    %v504 = vunpack.c.h.b16 %v428
    %v505 = vunpack.c.l.b16 %v429
    %v506 = vunpack.c.h.b16 %v429
    %v507 = vunpack.c.l.b16 %v430
    %v508 = vunpack.c.h.b16 %v430
    %v509 = vunpack.c.l.b16 %v431
    %v510 = vunpack.c.h.b16 %v431
    %v511 = vunpack.c.l.b16 %v432
    %v512 = vunpack.c.h.b16 %v432
    %v513 = vunpack.c.l.b16 %v433
    %v514 = vunpack.c.h.b16 %v433
    %v515 = vunpack.c.l.b16 %v434
    %v516 = vunpack.c.h.b16 %v434
    %v517 = vunpack.c.l.b16 %v435
    %v518 = vunpack.c.h.b16 %v435
    %v519 = vunpack.c.l.b16 %v436
    %v520 = vunpack.c.h.b16 %v436
    %v521 = vunpack.c.l.b16 %v437
    %v522 = vunpack.c.h.b16 %v437
    %v523 = vunpack.c.l.b16 %v438
    %v524 = vunpack.c.h.b16 %v438
    %v525 = vunpack.c.l.b16 %v439
    %v526 = vunpack.c.h.b16 %v439
    %v527 = vunpack.c.l.b16 %v440
    %v528 = vunpack.c.h.b16 %v440
    %v529 = vunpack.c.l.b16 %v441
    %v530 = vunpack.c.h.b16 %v441
    %v531 = vunpack.c.l.b16 %v442
    %v532 = vunpack.c.h.b16 %v442
    %v533 = vunpack.c.l.b16 %v443
    %v534 = vunpack.c.h.b16 %v443
    %v535 = vunpack.c.l.b16 %v444
    %v536 = vunpack.c.h.b16 %v444
    %v537 = vunpack.c.l.b16 %v445
    %v538 = vunpack.c.h.b16 %v445
    %v539 = vunpack.c.l.b16 %v446
    %v540 = vunpack.c.h.b16 %v446
    %v541 = vunpack.c.l.b16 %v447
    %v542 = vunpack.c.h.b16 %v447
    %v543 = vunpack.c.l.b16 %v448
    %v544 = vunpack.c.h.b16 %v448
    %v545 = vpack.c.b16 %v483, %v481
    %v546 = vpack.c.b16 %v484, %v482
    %v547 = vpack.c.b16 %v487, %v485
    %v548 = vpack.c.b16 %v488, %v486
    %v549 = vpack.c.b16 %v491, %v489
    %v550 = vpack.c.b16 %v492, %v490
    %v551 = vpack.c.b16 %v495, %v493
    %v552 = vpack.c.b16 %v496, %v494
    %v553 = vpack.c.b16 %v499, %v497
    %v554 = vpack.c.b16 %v500, %v498
    %v555 = vpack.c.b16 %v503, %v501
    %v556 = vpack.c.b16 %v504, %v502
    %v557 = vpack.c.b16 %v507, %v505
    %v558 = vpack.c.b16 %v508, %v506
    %v559 = vpack.c.b16 %v511, %v509
    %v560 = vpack.c.b16 %v512, %v510
    %v561 = vpack.c.b16 %v515, %v513
    %v562 = vpack.c.b16 %v516, %v514
    %v563 = vpack.c.b16 %v519, %v517
    %v564 = vpack.c.b16 %v520, %v518
    %v565 = vpack.c.b16 %v523, %v521
    %v566 = vpack.c.b16 %v524, %v522
    %v567 = vpack.c.b16 %v527, %v525
    %v568 = vpack.c.b16 %v528, %v526
    %v569 = vpack.c.b16 %v531, %v529
    %v570 = vpack.c.b16 %v532, %v530
    %v571 = vpack.c.b16 %v535, %v533
    %v572 = vpack.c.b16 %v536, %v534
    %v573 = vpack.c.b16 %v539, %v537
    %v574 = vpack.c.b16 %v540, %v538
    %v575 = vpack.c.b16 %v543, %v541
    %v576 = vpack.c.b16 %v544, %v542
    %609 = vmatprep.subr.bf16.mxu0 %v560
    %610 = vmatpush1.bf16.msra.mxu0 %v559
    %611 = vmatprep.subr.bf16.mxu0 %v558
    %612 = vmatpush1.bf16.msra.mxu0 %v557
    %613 = vmatprep.subr.bf16.mxu0 %v556
    %614 = vmatpush1.bf16.msra.mxu0 %v555
    %615 = vmatprep.subr.bf16.mxu0 %v554
    %616 = vmatpush1.bf16.msra.mxu0 %v553
    %617 = vmatprep.subr.bf16.mxu0 %v552
    %618 = vmatpush1.bf16.msra.mxu0 %v551
    %619 = vmatprep.subr.bf16.mxu0 %v550
    %620 = vmatpush1.bf16.msra.mxu0 %v549
    %621 = vmatprep.subr.bf16.mxu0 %v548
    %622 = vmatpush1.bf16.msra.mxu0 %v547
    %623 = vmatprep.subr.bf16.mxu0 %v546
    %624 = vmatpush1.bf16.msra.mxu0 %v545
    %625 = vmatprep.subr.bf16.mxu0 %v576
    %626 = vmatpush2.bf16.msra.mxu0 %v575
    %627 = vmatprep.subr.bf16.mxu0 %v574
    %628 = vmatpush2.bf16.msra.mxu0 %v573
    %629 = vmatprep.subr.bf16.mxu0 %v572
    %630 = vmatpush2.bf16.msra.mxu0 %v571
    %631 = vmatprep.subr.bf16.mxu0 %v570
    %632 = vmatpush2.bf16.msra.mxu0 %v569
    %633 = vmatprep.subr.bf16.mxu0 %v568
    %634 = vmatpush2.bf16.msra.mxu0 %v567
    %635 = vmatprep.subr.bf16.mxu0 %v566
    %636 = vmatpush2.bf16.msra.mxu0 %v565
    %637 = vmatprep.subr.bf16.mxu0 %v564
    %638 = vmatpush2.bf16.msra.mxu0 %v563
    %639 = vmatprep.subr.bf16.mxu0 %v562
    %640 = vmatpush2.bf16.msra.mxu0 %v561
    %641 = vmatprep.mubr.bf16.mxu0 %v402
    %642 = vmatmul.mubr.bf16.gmra.mxu0 %v401
    %v643 = vpop.f32.mrf.mxu0
    %v644 = vadd.f32 0.0, %v643
    %v645 = vpop.f32.mrf.mxu0
    %v646 = vadd.f32 0.0, %v645
    %v647 = vpop.f32.mrf.mxu0
    %v648 = vadd.f32 0.0, %v647
    %v649 = vpop.f32.mrf.mxu0
    %v650 = vadd.f32 0.0, %v649
    %651 = vmatprep.mubr.bf16.mxu0 %v404
    %652 = vmatmul.mubr.bf16.gmra.mxu0 %v403
    %v653 = vpop.f32.mrf.mxu0
    %v654 = vadd.f32 0.0, %v653
    %v655 = vpop.f32.mrf.mxu0
    %v656 = vadd.f32 0.0, %v655
    %v657 = vpop.f32.mrf.mxu0
    %v658 = vadd.f32 0.0, %v657
    %v659 = vpop.f32.mrf.mxu0
    %v660 = vadd.f32 0.0, %v659
    %661 = vmatprep.mubr.bf16.mxu0 %v406
    %662 = vmatmul.mubr.bf16.gmra.mxu0 %v405
    %v663 = vpop.f32.mrf.mxu0
    %v664 = vadd.f32 0.0, %v663
    %v665 = vpop.f32.mrf.mxu0
    %v666 = vadd.f32 0.0, %v665
    %v667 = vpop.f32.mrf.mxu0
    %v668 = vadd.f32 0.0, %v667
    %v669 = vpop.f32.mrf.mxu0
    %v670 = vadd.f32 0.0, %v669
    %671 = vmatprep.mubr.bf16.mxu0 %v408
    %672 = vmatmul.mubr.bf16.gmra.mxu0 %v407
    %v673 = vpop.f32.mrf.mxu0
    %v674 = vadd.f32 0.0, %v673
    %v675 = vpop.f32.mrf.mxu0
    %v676 = vadd.f32 0.0, %v675
    %v677 = vpop.f32.mrf.mxu0
    %v678 = vadd.f32 0.0, %v677
    %v679 = vpop.f32.mrf.mxu0
    %v680 = vadd.f32 0.0, %v679
    %681 = vmatprep.mubr.bf16.mxu0 %v410
    %682 = vmatmul.mubr.bf16.gmra.mxu0 %v409
    %v683 = vpop.f32.mrf.mxu0
    %v684 = vadd.f32 0.0, %v683
    %v685 = vpop.f32.mrf.mxu0
    %v686 = vadd.f32 0.0, %v685
    %v687 = vpop.f32.mrf.mxu0
    %v688 = vadd.f32 0.0, %v687
    %v689 = vpop.f32.mrf.mxu0
    %v690 = vadd.f32 0.0, %v689
    %691 = vmatprep.mubr.bf16.mxu0 %v412
    %692 = vmatmul.mubr.bf16.gmra.mxu0 %v411
    %v693 = vpop.f32.mrf.mxu0
    %v694 = vadd.f32 0.0, %v693
    %v695 = vpop.f32.mrf.mxu0
    %v696 = vadd.f32 0.0, %v695
    %v697 = vpop.f32.mrf.mxu0
    %v698 = vadd.f32 0.0, %v697
    %v699 = vpop.f32.mrf.mxu0
    %v700 = vadd.f32 0.0, %v699
    %701 = vmatprep.mubr.bf16.mxu0 %v414
    %702 = vmatmul.mubr.bf16.gmra.mxu0 %v413
    %v703 = vpop.f32.mrf.mxu0
    %v704 = vadd.f32 0.0, %v703
    %v705 = vpop.f32.mrf.mxu0
    %v706 = vadd.f32 0.0, %v705
    %v707 = vpop.f32.mrf.mxu0
    %v708 = vadd.f32 0.0, %v707
    %v709 = vpop.f32.mrf.mxu0
    %v710 = vadd.f32 0.0, %v709
    %711 = vmatprep.mubr.bf16.mxu0 %v416
    %712 = vmatmul.mubr.bf16.gmra.mxu0 %v415
    %v713 = vpop.f32.mrf.mxu0
    %v714 = vadd.f32 0.0, %v713
    %v715 = vpop.f32.mrf.mxu0
    %v716 = vadd.f32 0.0, %v715
    %v717 = vpop.f32.mrf.mxu0
    %v718 = vadd.f32 0.0, %v717
    %v719 = vpop.f32.mrf.mxu0
    %v720 = vadd.f32 0.0, %v719
    %721 = vdwg.mxu0
    %v722 = vsub.f32 0.0, %v644
    %v723 = vsub.f32 0.0, %v646
    %v724 = vsub.f32 0.0, %v648
    %v725 = vsub.f32 0.0, %v650
    %v726 = vsub.f32 0.0, %v654
    %v727 = vsub.f32 0.0, %v656
    %v728 = vsub.f32 0.0, %v658
    %v729 = vsub.f32 0.0, %v660
    %v730 = vsub.f32 0.0, %v664
    %v731 = vsub.f32 0.0, %v666
    %v732 = vsub.f32 0.0, %v668
    %v733 = vsub.f32 0.0, %v670
    %v734 = vsub.f32 0.0, %v674
    %v735 = vsub.f32 0.0, %v676
    %v736 = vsub.f32 0.0, %v678
    %v737 = vsub.f32 0.0, %v680
    %v738 = vsub.f32 0.0, %v684
    %v739 = vsub.f32 0.0, %v686
    %v740 = vsub.f32 0.0, %v688
    %v741 = vsub.f32 0.0, %v690
    %v742 = vsub.f32 0.0, %v694
    %v743 = vsub.f32 0.0, %v696
    %v744 = vsub.f32 0.0, %v698
    %v745 = vsub.f32 0.0, %v700
    %v746 = vsub.f32 0.0, %v704
    %v747 = vsub.f32 0.0, %v706
    %v748 = vsub.f32 0.0, %v708
    %v749 = vsub.f32 0.0, %v710
    %v750 = vsub.f32 0.0, %v714
    %v751 = vsub.f32 0.0, %v716
    %v752 = vsub.f32 0.0, %v718
    %v753 = vsub.f32 0.0, %v720
    %v754 = vmul.f32 %v722, 1.442695
    %v755 = vpow.pop %v754
    %v756 = vmul.f32 %v723, 1.442695
    %v757 = vpow.pop %v756
    %v758 = vmul.f32 %v724, 1.442695
    %v759 = vpow.pop %v758
    %v760 = vmul.f32 %v725, 1.442695
    %v761 = vpow.pop %v760
    %v762 = vmul.f32 %v726, 1.442695
    %v763 = vpow.pop %v762
    %v764 = vmul.f32 %v727, 1.442695
    %v765 = vpow.pop %v764
    %v766 = vmul.f32 %v728, 1.442695
    %v767 = vpow.pop %v766
    %v768 = vmul.f32 %v729, 1.442695
    %v769 = vpow.pop %v768
    %v770 = vmul.f32 %v730, 1.442695
    %v771 = vpow.pop %v770
    %v772 = vmul.f32 %v731, 1.442695
    %v773 = vpow.pop %v772
    %v774 = vmul.f32 %v732, 1.442695
    %v775 = vpow.pop %v774
    %v776 = vmul.f32 %v733, 1.442695
    %v777 = vpow.pop %v776
    %v778 = vmul.f32 %v734, 1.442695
    %v779 = vpow.pop %v778
    %v780 = vmul.f32 %v735, 1.442695
    %v781 = vpow.pop %v780
    %v782 = vmul.f32 %v736, 1.442695
    %v783 = vpow.pop %v782
    %v784 = vmul.f32 %v737, 1.442695
    %v785 = vpow.pop %v784
    %v786 = vmul.f32 %v738, 1.442695
    %v787 = vpow.pop %v786
    %v788 = vmul.f32 %v739, 1.442695
    %v789 = vpow.pop %v788
    %v790 = vmul.f32 %v740, 1.442695
    %v791 = vpow.pop %v790
    %v792 = vmul.f32 %v741, 1.442695
    %v793 = vpow.pop %v792
    %v794 = vmul.f32 %v742, 1.442695
    %v795 = vpow.pop %v794
    %v796 = vmul.f32 %v743, 1.442695
    %v797 = vpow.pop %v796
    %v798 = vmul.f32 %v744, 1.442695
    %v799 = vpow.pop %v798
    %v800 = vmul.f32 %v745, 1.442695
    %v801 = vpow.pop %v800
    %v802 = vmul.f32 %v746, 1.442695
    %v803 = vpow.pop %v802
    %v804 = vmul.f32 %v747, 1.442695
    %v805 = vpow.pop %v804
    %v806 = vmul.f32 %v748, 1.442695
    %v807 = vpow.pop %v806
    %v808 = vmul.f32 %v749, 1.442695
    %v809 = vpow.pop %v808
    %v810 = vmul.f32 %v750, 1.442695
    %v811 = vpow.pop %v810
    %v812 = vmul.f32 %v751, 1.442695
    %v813 = vpow.pop %v812
    %v814 = vmul.f32 %v752, 1.442695
    %v815 = vpow.pop %v814
    %v816 = vmul.f32 %v753, 1.442695
    %v817 = vpow.pop %v816
    %v818 = vadd.f32 %v755, 1.0
    %v819 = vadd.f32 %v757, 1.0
    %v820 = vadd.f32 %v759, 1.0
    %v821 = vadd.f32 %v761, 1.0
    %v822 = vadd.f32 %v763, 1.0
    %v823 = vadd.f32 %v765, 1.0
    %v824 = vadd.f32 %v767, 1.0
    %v825 = vadd.f32 %v769, 1.0
    %v826 = vadd.f32 %v771, 1.0
    %v827 = vadd.f32 %v773, 1.0
    %v828 = vadd.f32 %v775, 1.0
    %v829 = vadd.f32 %v777, 1.0
    %v830 = vadd.f32 %v779, 1.0
    %v831 = vadd.f32 %v781, 1.0
    %v832 = vadd.f32 %v783, 1.0
    %v833 = vadd.f32 %v785, 1.0
    %v834 = vadd.f32 %v787, 1.0
    %v835 = vadd.f32 %v789, 1.0
    %v836 = vadd.f32 %v791, 1.0
    %v837 = vadd.f32 %v793, 1.0
    %v838 = vadd.f32 %v795, 1.0
    %v839 = vadd.f32 %v797, 1.0
    %v840 = vadd.f32 %v799, 1.0
    %v841 = vadd.f32 %v801, 1.0
    %v842 = vadd.f32 %v803, 1.0
    %v843 = vadd.f32 %v805, 1.0
    %v844 = vadd.f32 %v807, 1.0
    %v845 = vadd.f32 %v809, 1.0
    %v846 = vadd.f32 %v811, 1.0
    %v847 = vadd.f32 %v813, 1.0
    %v848 = vadd.f32 %v815, 1.0
    %v849 = vadd.f32 %v817, 1.0
    %v850 = vrcp.pop %v818
    %v851 = vrcp.pop %v819
    %v852 = vrcp.pop %v820
    %v853 = vrcp.pop %v821
    %v854 = vrcp.pop %v822
    %v855 = vrcp.pop %v823
    %v856 = vrcp.pop %v824
    %v857 = vrcp.pop %v825
    %v858 = vrcp.pop %v826
    %v859 = vrcp.pop %v827
    %v860 = vrcp.pop %v828
    %v861 = vrcp.pop %v829
    %v862 = vrcp.pop %v830
    %v863 = vrcp.pop %v831
    %v864 = vrcp.pop %v832
    %v865 = vrcp.pop %v833
    %v866 = vrcp.pop %v834
    %v867 = vrcp.pop %v835
    %v868 = vrcp.pop %v836
    %v869 = vrcp.pop %v837
    %v870 = vrcp.pop %v838
    %v871 = vrcp.pop %v839
    %v872 = vrcp.pop %v840
    %v873 = vrcp.pop %v841
    %v874 = vrcp.pop %v842
    %v875 = vrcp.pop %v843
    %v876 = vrcp.pop %v844
    %v877 = vrcp.pop %v845
    %v878 = vrcp.pop %v846
    %v879 = vrcp.pop %v847
    %v880 = vrcp.pop %v848
    %v881 = vrcp.pop %v849
    %v882 = vmul.f32 %v644, %v850
    %v883 = vmul.f32 %v646, %v851
    %v884 = vmul.f32 %v648, %v852
    %v885 = vmul.f32 %v650, %v853
    %v886 = vmul.f32 %v654, %v854
    %v887 = vmul.f32 %v656, %v855
    %v888 = vmul.f32 %v658, %v856
    %v889 = vmul.f32 %v660, %v857
    %v890 = vmul.f32 %v664, %v858
    %v891 = vmul.f32 %v666, %v859
    %v892 = vmul.f32 %v668, %v860
    %v893 = vmul.f32 %v670, %v861
    %v894 = vmul.f32 %v674, %v862
    %v895 = vmul.f32 %v676, %v863
    %v896 = vmul.f32 %v678, %v864
    %v897 = vmul.f32 %v680, %v865
    %v898 = vmul.f32 %v684, %v866
    %v899 = vmul.f32 %v686, %v867
    %v900 = vmul.f32 %v688, %v868
    %v901 = vmul.f32 %v690, %v869
    %v902 = vmul.f32 %v694, %v870
    %v903 = vmul.f32 %v696, %v871
    %v904 = vmul.f32 %v698, %v872
    %v905 = vmul.f32 %v700, %v873
    %v906 = vmul.f32 %v704, %v874
    %v907 = vmul.f32 %v706, %v875
    %v908 = vmul.f32 %v708, %v876
    %v909 = vmul.f32 %v710, %v877
    %v910 = vmul.f32 %v714, %v878
    %v911 = vmul.f32 %v716, %v879
    %v912 = vmul.f32 %v718, %v880
    %v913 = vmul.f32 %v720, %v881
    %v914 = vpack.c.bf16 %v884, %v882
    %v915 = vpack.c.bf16 %v885, %v883
    %v916 = vpack.c.bf16 %v888, %v886
    %v917 = vpack.c.bf16 %v889, %v887
    %v918 = vpack.c.bf16 %v892, %v890
    %v919 = vpack.c.bf16 %v893, %v891
    %v920 = vpack.c.bf16 %v896, %v894
    %v921 = vpack.c.bf16 %v897, %v895
    %v922 = vpack.c.bf16 %v900, %v898
    %v923 = vpack.c.bf16 %v901, %v899
    %v924 = vpack.c.bf16 %v904, %v902
    %v925 = vpack.c.bf16 %v905, %v903
    %v926 = vpack.c.bf16 %v908, %v906
    %v927 = vpack.c.bf16 %v909, %v907
    %v928 = vpack.c.bf16 %v912, %v910
    %v929 = vpack.c.bf16 %v913, %v911
    %v930 = vld [vmem:[#allocation2] sm:$0xff]
    %v931 = vld [vmem:[#allocation2 + $0x8] sm:$0xff]
    %v932 = vld [vmem:[#allocation2 + $0x10] sm:$0xff]
    %v933 = vld [vmem:[#allocation2 + $0x18] sm:$0xff]
    %v934 = vld [vmem:[#allocation2 + $0x20] sm:$0xff]
    %v935 = vld [vmem:[#allocation2 + $0x28] sm:$0xff]
    %v936 = vld [vmem:[#allocation2 + $0x30] sm:$0xff]
    %v937 = vld [vmem:[#allocation2 + $0x38] sm:$0xff]
    %v938 = vld [vmem:[#allocation2 + $0x40] sm:$0xff]
    %v939 = vld [vmem:[#allocation2 + $0x48] sm:$0xff]
    %v940 = vld [vmem:[#allocation2 + $0x50] sm:$0xff]
    %v941 = vld [vmem:[#allocation2 + $0x58] sm:$0xff]
    %v942 = vld [vmem:[#allocation2 + $0x60] sm:$0xff]
    %v943 = vld [vmem:[#allocation2 + $0x68] sm:$0xff]
    %v944 = vld [vmem:[#allocation2 + $0x70] sm:$0xff]
    %v945 = vld [vmem:[#allocation2 + $0x78] sm:$0xff]
    %v946 = vld [vmem:[#allocation2 + $0x80] sm:$0xff]
    %v947 = vld [vmem:[#allocation2 + $0x88] sm:$0xff]
    %v948 = vld [vmem:[#allocation2 + $0x90] sm:$0xff]
    %v949 = vld [vmem:[#allocation2 + $0x98] sm:$0xff]
    %v950 = vld [vmem:[#allocation2 + $0xa0] sm:$0xff]
    %v951 = vld [vmem:[#allocation2 + $0xa8] sm:$0xff]
    %v952 = vld [vmem:[#allocation2 + $0xb0] sm:$0xff]
    %v953 = vld [vmem:[#allocation2 + $0xb8] sm:$0xff]
    %v954 = vld [vmem:[#allocation2 + $0xc0] sm:$0xff]
    %v955 = vld [vmem:[#allocation2 + $0xc8] sm:$0xff]
    %v956 = vld [vmem:[#allocation2 + $0xd0] sm:$0xff]
    %v957 = vld [vmem:[#allocation2 + $0xd8] sm:$0xff]
    %v958 = vld [vmem:[#allocation2 + $0xe0] sm:$0xff]
    %v959 = vld [vmem:[#allocation2 + $0xe8] sm:$0xff]
    %v960 = vld [vmem:[#allocation2 + $0xf0] sm:$0xff]
    %v961 = vld [vmem:[#allocation2 + $0xf8] sm:$0xff]
    %v994 = vunpack.c.l.b16 %v930
    %v995 = vunpack.c.h.b16 %v930
    %v996 = vunpack.c.l.b16 %v931
    %v997 = vunpack.c.h.b16 %v931
    %v998 = vunpack.c.l.b16 %v932
    %v999 = vunpack.c.h.b16 %v932
    %v1000 = vunpack.c.l.b16 %v933
    %v1001 = vunpack.c.h.b16 %v933
    %v1002 = vunpack.c.l.b16 %v934
    %v1003 = vunpack.c.h.b16 %v934
    %v1004 = vunpack.c.l.b16 %v935
    %v1005 = vunpack.c.h.b16 %v935
    %v1006 = vunpack.c.l.b16 %v936
    %v1007 = vunpack.c.h.b16 %v936
    %v1008 = vunpack.c.l.b16 %v937
    %v1009 = vunpack.c.h.b16 %v937
    %v1010 = vunpack.c.l.b16 %v938
    %v1011 = vunpack.c.h.b16 %v938
    %v1012 = vunpack.c.l.b16 %v939
    %v1013 = vunpack.c.h.b16 %v939
    %v1014 = vunpack.c.l.b16 %v940
    %v1015 = vunpack.c.h.b16 %v940
    %v1016 = vunpack.c.l.b16 %v941
    %v1017 = vunpack.c.h.b16 %v941
    %v1018 = vunpack.c.l.b16 %v942
    %v1019 = vunpack.c.h.b16 %v942
    %v1020 = vunpack.c.l.b16 %v943
    %v1021 = vunpack.c.h.b16 %v943
    %v1022 = vunpack.c.l.b16 %v944
    %v1023 = vunpack.c.h.b16 %v944
    %v1024 = vunpack.c.l.b16 %v945
    %v1025 = vunpack.c.h.b16 %v945
    %v1026 = vunpack.c.l.b16 %v946
    %v1027 = vunpack.c.h.b16 %v946
    %v1028 = vunpack.c.l.b16 %v947
    %v1029 = vunpack.c.h.b16 %v947
    %v1030 = vunpack.c.l.b16 %v948
    %v1031 = vunpack.c.h.b16 %v948
    %v1032 = vunpack.c.l.b16 %v949
    %v1033 = vunpack.c.h.b16 %v949
    %v1034 = vunpack.c.l.b16 %v950
    %v1035 = vunpack.c.h.b16 %v950
    %v1036 = vunpack.c.l.b16 %v951
    %v1037 = vunpack.c.h.b16 %v951
    %v1038 = vunpack.c.l.b16 %v952
    %v1039 = vunpack.c.h.b16 %v952
    %v1040 = vunpack.c.l.b16 %v953
    %v1041 = vunpack.c.h.b16 %v953
    %v1042 = vunpack.c.l.b16 %v954
    %v1043 = vunpack.c.h.b16 %v954
    %v1044 = vunpack.c.l.b16 %v955
    %v1045 = vunpack.c.h.b16 %v955
    %v1046 = vunpack.c.l.b16 %v956
    %v1047 = vunpack.c.h.b16 %v956
    %v1048 = vunpack.c.l.b16 %v957
    %v1049 = vunpack.c.h.b16 %v957
    %v1050 = vunpack.c.l.b16 %v958
    %v1051 = vunpack.c.h.b16 %v958
    %v1052 = vunpack.c.l.b16 %v959
    %v1053 = vunpack.c.h.b16 %v959
    %v1054 = vunpack.c.l.b16 %v960
    %v1055 = vunpack.c.h.b16 %v960
    %v1056 = vunpack.c.l.b16 %v961
    %v1057 = vunpack.c.h.b16 %v961
    %v1058 = vpack.c.b16 %v996, %v994
    %v1059 = vpack.c.b16 %v997, %v995
    %v1060 = vpack.c.b16 %v1000, %v998
    %v1061 = vpack.c.b16 %v1001, %v999
    %v1062 = vpack.c.b16 %v1004, %v1002
    %v1063 = vpack.c.b16 %v1005, %v1003
    %v1064 = vpack.c.b16 %v1008, %v1006
    %v1065 = vpack.c.b16 %v1009, %v1007
    %v1066 = vpack.c.b16 %v1012, %v1010
    %v1067 = vpack.c.b16 %v1013, %v1011
    %v1068 = vpack.c.b16 %v1016, %v1014
    %v1069 = vpack.c.b16 %v1017, %v1015
    %v1070 = vpack.c.b16 %v1020, %v1018
    %v1071 = vpack.c.b16 %v1021, %v1019
    %v1072 = vpack.c.b16 %v1024, %v1022
    %v1073 = vpack.c.b16 %v1025, %v1023
    %v1074 = vpack.c.b16 %v1028, %v1026
    %v1075 = vpack.c.b16 %v1029, %v1027
    %v1076 = vpack.c.b16 %v1032, %v1030
    %v1077 = vpack.c.b16 %v1033, %v1031
    %v1078 = vpack.c.b16 %v1036, %v1034
    %v1079 = vpack.c.b16 %v1037, %v1035
    %v1080 = vpack.c.b16 %v1040, %v1038
    %v1081 = vpack.c.b16 %v1041, %v1039
    %v1082 = vpack.c.b16 %v1044, %v1042
    %v1083 = vpack.c.b16 %v1045, %v1043
    %v1084 = vpack.c.b16 %v1048, %v1046
    %v1085 = vpack.c.b16 %v1049, %v1047
    %v1086 = vpack.c.b16 %v1052, %v1050
    %v1087 = vpack.c.b16 %v1053, %v1051
    %v1088 = vpack.c.b16 %v1056, %v1054
    %v1089 = vpack.c.b16 %v1057, %v1055
    %1122 = vmatprep.subr.bf16.mxu0 %v1073
    %1123 = vmatpush1.bf16.msra.mxu0 %v1072
    %1124 = vmatprep.subr.bf16.mxu0 %v1071
    %1125 = vmatpush1.bf16.msra.mxu0 %v1070
    %1126 = vmatprep.subr.bf16.mxu0 %v1069
    %1127 = vmatpush1.bf16.msra.mxu0 %v1068
    %1128 = vmatprep.subr.bf16.mxu0 %v1067
    %1129 = vmatpush1.bf16.msra.mxu0 %v1066
    %1130 = vmatprep.subr.bf16.mxu0 %v1065
    %1131 = vmatpush1.bf16.msra.mxu0 %v1064
    %1132 = vmatprep.subr.bf16.mxu0 %v1063
    %1133 = vmatpush1.bf16.msra.mxu0 %v1062
    %1134 = vmatprep.subr.bf16.mxu0 %v1061
    %1135 = vmatpush1.bf16.msra.mxu0 %v1060
    %1136 = vmatprep.subr.bf16.mxu0 %v1059
    %1137 = vmatpush1.bf16.msra.mxu0 %v1058
    %1138 = vmatprep.subr.bf16.mxu0 %v1089
    %1139 = vmatpush2.bf16.msra.mxu0 %v1088
    %1140 = vmatprep.subr.bf16.mxu0 %v1087
    %1141 = vmatpush2.bf16.msra.mxu0 %v1086
    %1142 = vmatprep.subr.bf16.mxu0 %v1085
    %1143 = vmatpush2.bf16.msra.mxu0 %v1084
    %1144 = vmatprep.subr.bf16.mxu0 %v1083
    %1145 = vmatpush2.bf16.msra.mxu0 %v1082
    %1146 = vmatprep.subr.bf16.mxu0 %v1081
    %1147 = vmatpush2.bf16.msra.mxu0 %v1080
    %1148 = vmatprep.subr.bf16.mxu0 %v1079
    %1149 = vmatpush2.bf16.msra.mxu0 %v1078
    %1150 = vmatprep.subr.bf16.mxu0 %v1077
    %1151 = vmatpush2.bf16.msra.mxu0 %v1076
    %1152 = vmatprep.subr.bf16.mxu0 %v1075
    %1153 = vmatpush2.bf16.msra.mxu0 %v1074
    %1154 = vmatprep.mubr.bf16.mxu0 %v915
    %1155 = vmatmul.mubr.bf16.gmra.mxu0 %v914
    %v1156 = vpop.f32.mrf.mxu0
    %v1157 = vadd.f32 0.0, %v1156
    %v1158 = vpop.f32.mrf.mxu0
    %v1159 = vadd.f32 0.0, %v1158
    %v1160 = vpop.f32.mrf.mxu0
    %v1161 = vadd.f32 0.0, %v1160
    %v1162 = vpop.f32.mrf.mxu0
    %v1163 = vadd.f32 0.0, %v1162
    %1164 = vmatprep.mubr.bf16.mxu0 %v917
    %1165 = vmatmul.mubr.bf16.gmra.mxu0 %v916
    %v1166 = vpop.f32.mrf.mxu0
    %v1167 = vadd.f32 0.0, %v1166
    %v1168 = vpop.f32.mrf.mxu0
    %v1169 = vadd.f32 0.0, %v1168
    %v1170 = vpop.f32.mrf.mxu0
    %v1171 = vadd.f32 0.0, %v1170
    %v1172 = vpop.f32.mrf.mxu0
    %v1173 = vadd.f32 0.0, %v1172
    %1174 = vmatprep.mubr.bf16.mxu0 %v919
    %1175 = vmatmul.mubr.bf16.gmra.mxu0 %v918
    %v1176 = vpop.f32.mrf.mxu0
    %v1177 = vadd.f32 0.0, %v1176
    %v1178 = vpop.f32.mrf.mxu0
    %v1179 = vadd.f32 0.0, %v1178
    %v1180 = vpop.f32.mrf.mxu0
    %v1181 = vadd.f32 0.0, %v1180
    %v1182 = vpop.f32.mrf.mxu0
    %v1183 = vadd.f32 0.0, %v1182
    %1184 = vmatprep.mubr.bf16.mxu0 %v921
    %1185 = vmatmul.mubr.bf16.gmra.mxu0 %v920
    %v1186 = vpop.f32.mrf.mxu0
    %v1187 = vadd.f32 0.0, %v1186
    %v1188 = vpop.f32.mrf.mxu0
    %v1189 = vadd.f32 0.0, %v1188
    %v1190 = vpop.f32.mrf.mxu0
    %v1191 = vadd.f32 0.0, %v1190
    %v1192 = vpop.f32.mrf.mxu0
    %v1193 = vadd.f32 0.0, %v1192
    %1194 = vmatprep.mubr.bf16.mxu0 %v923
    %1195 = vmatmul.mubr.bf16.gmra.mxu0 %v922
    %v1196 = vpop.f32.mrf.mxu0
    %v1197 = vadd.f32 0.0, %v1196
    %v1198 = vpop.f32.mrf.mxu0
    %v1199 = vadd.f32 0.0, %v1198
    %v1200 = vpop.f32.mrf.mxu0
    %v1201 = vadd.f32 0.0, %v1200
    %v1202 = vpop.f32.mrf.mxu0
    %v1203 = vadd.f32 0.0, %v1202
    %1204 = vmatprep.mubr.bf16.mxu0 %v925
    %1205 = vmatmul.mubr.bf16.gmra.mxu0 %v924
    %v1206 = vpop.f32.mrf.mxu0
    %v1207 = vadd.f32 0.0, %v1206
    %v1208 = vpop.f32.mrf.mxu0
    %v1209 = vadd.f32 0.0, %v1208
    %v1210 = vpop.f32.mrf.mxu0
    %v1211 = vadd.f32 0.0, %v1210
    %v1212 = vpop.f32.mrf.mxu0
    %v1213 = vadd.f32 0.0, %v1212
    %1214 = vmatprep.mubr.bf16.mxu0 %v927
    %1215 = vmatmul.mubr.bf16.gmra.mxu0 %v926
    %v1216 = vpop.f32.mrf.mxu0
    %v1217 = vadd.f32 0.0, %v1216
    %v1218 = vpop.f32.mrf.mxu0
    %v1219 = vadd.f32 0.0, %v1218
    %v1220 = vpop.f32.mrf.mxu0
    %v1221 = vadd.f32 0.0, %v1220
    %v1222 = vpop.f32.mrf.mxu0
    %v1223 = vadd.f32 0.0, %v1222
    %1224 = vmatprep.mubr.bf16.mxu0 %v929
    %1225 = vmatmul.mubr.bf16.gmra.mxu0 %v928
    %v1226 = vpop.f32.mrf.mxu0
    %v1227 = vadd.f32 0.0, %v1226
    %v1228 = vpop.f32.mrf.mxu0
    %v1229 = vadd.f32 0.0, %v1228
    %v1230 = vpop.f32.mrf.mxu0
    %v1231 = vadd.f32 0.0, %v1230
    %v1232 = vpop.f32.mrf.mxu0
    %v1233 = vadd.f32 0.0, %v1232
    %1234 = vdwg.mxu0
    %v1235 = vsub.f32 0.0, %v1157
    %v1236 = vsub.f32 0.0, %v1159
    %v1237 = vsub.f32 0.0, %v1161
    %v1238 = vsub.f32 0.0, %v1163
    %v1239 = vsub.f32 0.0, %v1167
    %v1240 = vsub.f32 0.0, %v1169
    %v1241 = vsub.f32 0.0, %v1171
    %v1242 = vsub.f32 0.0, %v1173
    %v1243 = vsub.f32 0.0, %v1177
    %v1244 = vsub.f32 0.0, %v1179
    %v1245 = vsub.f32 0.0, %v1181
    %v1246 = vsub.f32 0.0, %v1183
    %v1247 = vsub.f32 0.0, %v1187
    %v1248 = vsub.f32 0.0, %v1189
    %v1249 = vsub.f32 0.0, %v1191
    %v1250 = vsub.f32 0.0, %v1193
    %v1251 = vsub.f32 0.0, %v1197
    %v1252 = vsub.f32 0.0, %v1199
    %v1253 = vsub.f32 0.0, %v1201
    %v1254 = vsub.f32 0.0, %v1203
    %v1255 = vsub.f32 0.0, %v1207
    %v1256 = vsub.f32 0.0, %v1209
    %v1257 = vsub.f32 0.0, %v1211
    %v1258 = vsub.f32 0.0, %v1213
    %v1259 = vsub.f32 0.0, %v1217
    %v1260 = vsub.f32 0.0, %v1219
    %v1261 = vsub.f32 0.0, %v1221
    %v1262 = vsub.f32 0.0, %v1223
    %v1263 = vsub.f32 0.0, %v1227
    %v1264 = vsub.f32 0.0, %v1229
    %v1265 = vsub.f32 0.0, %v1231
    %v1266 = vsub.f32 0.0, %v1233
    %v1267 = vmul.f32 %v1235, 1.442695
    %v1268 = vpow.pop %v1267
    %v1269 = vmul.f32 %v1236, 1.442695
    %v1270 = vpow.pop %v1269
    %v1271 = vmul.f32 %v1237, 1.442695
    %v1272 = vpow.pop %v1271
    %v1273 = vmul.f32 %v1238, 1.442695
    %v1274 = vpow.pop %v1273
    %v1275 = vmul.f32 %v1239, 1.442695
    %v1276 = vpow.pop %v1275
    %v1277 = vmul.f32 %v1240, 1.442695
    %v1278 = vpow.pop %v1277
    %v1279 = vmul.f32 %v1241, 1.442695
    %v1280 = vpow.pop %v1279
    %v1281 = vmul.f32 %v1242, 1.442695
    %v1282 = vpow.pop %v1281
    %v1283 = vmul.f32 %v1243, 1.442695
    %v1284 = vpow.pop %v1283
    %v1285 = vmul.f32 %v1244, 1.442695
    %v1286 = vpow.pop %v1285
    %v1287 = vmul.f32 %v1245, 1.442695
    %v1288 = vpow.pop %v1287
    %v1289 = vmul.f32 %v1246, 1.442695
    %v1290 = vpow.pop %v1289
    %v1291 = vmul.f32 %v1247, 1.442695
    %v1292 = vpow.pop %v1291
    %v1293 = vmul.f32 %v1248, 1.442695
    %v1294 = vpow.pop %v1293
    %v1295 = vmul.f32 %v1249, 1.442695
    %v1296 = vpow.pop %v1295
    %v1297 = vmul.f32 %v1250, 1.442695
    %v1298 = vpow.pop %v1297
    %v1299 = vmul.f32 %v1251, 1.442695
    %v1300 = vpow.pop %v1299
    %v1301 = vmul.f32 %v1252, 1.442695
    %v1302 = vpow.pop %v1301
    %v1303 = vmul.f32 %v1253, 1.442695
    %v1304 = vpow.pop %v1303
    %v1305 = vmul.f32 %v1254, 1.442695
    %v1306 = vpow.pop %v1305
    %v1307 = vmul.f32 %v1255, 1.442695
    %v1308 = vpow.pop %v1307
    %v1309 = vmul.f32 %v1256, 1.442695
    %v1310 = vpow.pop %v1309
    %v1311 = vmul.f32 %v1257, 1.442695
    %v1312 = vpow.pop %v1311
    %v1313 = vmul.f32 %v1258, 1.442695
    %v1314 = vpow.pop %v1313
    %v1315 = vmul.f32 %v1259, 1.442695
    %v1316 = vpow.pop %v1315
    %v1317 = vmul.f32 %v1260, 1.442695
    %v1318 = vpow.pop %v1317
    %v1319 = vmul.f32 %v1261, 1.442695
    %v1320 = vpow.pop %v1319
    %v1321 = vmul.f32 %v1262, 1.442695
    %v1322 = vpow.pop %v1321
    %v1323 = vmul.f32 %v1263, 1.442695
    %v1324 = vpow.pop %v1323
    %v1325 = vmul.f32 %v1264, 1.442695
    %v1326 = vpow.pop %v1325
    %v1327 = vmul.f32 %v1265, 1.442695
    %v1328 = vpow.pop %v1327
    %v1329 = vmul.f32 %v1266, 1.442695
    %v1330 = vpow.pop %v1329
    %v1331 = vadd.f32 %v1268, 1.0
    %v1332 = vadd.f32 %v1270, 1.0
    %v1333 = vadd.f32 %v1272, 1.0
    %v1334 = vadd.f32 %v1274, 1.0
    %v1335 = vadd.f32 %v1276, 1.0
    %v1336 = vadd.f32 %v1278, 1.0
    %v1337 = vadd.f32 %v1280, 1.0
    %v1338 = vadd.f32 %v1282, 1.0
    %v1339 = vadd.f32 %v1284, 1.0
    %v1340 = vadd.f32 %v1286, 1.0
    %v1341 = vadd.f32 %v1288, 1.0
    %v1342 = vadd.f32 %v1290, 1.0
    %v1343 = vadd.f32 %v1292, 1.0
    %v1344 = vadd.f32 %v1294, 1.0
    %v1345 = vadd.f32 %v1296, 1.0
    %v1346 = vadd.f32 %v1298, 1.0
    %v1347 = vadd.f32 %v1300, 1.0
    %v1348 = vadd.f32 %v1302, 1.0
    %v1349 = vadd.f32 %v1304, 1.0
    %v1350 = vadd.f32 %v1306, 1.0
    %v1351 = vadd.f32 %v1308, 1.0
    %v1352 = vadd.f32 %v1310, 1.0
    %v1353 = vadd.f32 %v1312, 1.0
    %v1354 = vadd.f32 %v1314, 1.0
    %v1355 = vadd.f32 %v1316, 1.0
    %v1356 = vadd.f32 %v1318, 1.0
    %v1357 = vadd.f32 %v1320, 1.0
    %v1358 = vadd.f32 %v1322, 1.0
    %v1359 = vadd.f32 %v1324, 1.0
    %v1360 = vadd.f32 %v1326, 1.0
    %v1361 = vadd.f32 %v1328, 1.0
    %v1362 = vadd.f32 %v1330, 1.0
    %v1363 = vrcp.pop %v1331
    %v1364 = vrcp.pop %v1332
    %v1365 = vrcp.pop %v1333
    %v1366 = vrcp.pop %v1334
    %v1367 = vrcp.pop %v1335
    %v1368 = vrcp.pop %v1336
    %v1369 = vrcp.pop %v1337
    %v1370 = vrcp.pop %v1338
    %v1371 = vrcp.pop %v1339
    %v1372 = vrcp.pop %v1340
    %v1373 = vrcp.pop %v1341
    %v1374 = vrcp.pop %v1342
    %v1375 = vrcp.pop %v1343
    %v1376 = vrcp.pop %v1344
    %v1377 = vrcp.pop %v1345
    %v1378 = vrcp.pop %v1346
    %v1379 = vrcp.pop %v1347
    %v1380 = vrcp.pop %v1348
    %v1381 = vrcp.pop %v1349
    %v1382 = vrcp.pop %v1350
    %v1383 = vrcp.pop %v1351
    %v1384 = vrcp.pop %v1352
    %v1385 = vrcp.pop %v1353
    %v1386 = vrcp.pop %v1354
    %v1387 = vrcp.pop %v1355
    %v1388 = vrcp.pop %v1356
    %v1389 = vrcp.pop %v1357
    %v1390 = vrcp.pop %v1358
    %v1391 = vrcp.pop %v1359
    %v1392 = vrcp.pop %v1360
    %v1393 = vrcp.pop %v1361
    %v1394 = vrcp.pop %v1362
    %v1395 = vmul.f32 %v1157, %v1363
    %v1396 = vmul.f32 %v1159, %v1364
    %v1397 = vmul.f32 %v1161, %v1365
    %v1398 = vmul.f32 %v1163, %v1366
    %v1399 = vmul.f32 %v1167, %v1367
    %v1400 = vmul.f32 %v1169, %v1368
    %v1401 = vmul.f32 %v1171, %v1369
    %v1402 = vmul.f32 %v1173, %v1370
    %v1403 = vmul.f32 %v1177, %v1371
    %v1404 = vmul.f32 %v1179, %v1372
    %v1405 = vmul.f32 %v1181, %v1373
    %v1406 = vmul.f32 %v1183, %v1374
    %v1407 = vmul.f32 %v1187, %v1375
    %v1408 = vmul.f32 %v1189, %v1376
    %v1409 = vmul.f32 %v1191, %v1377
    %v1410 = vmul.f32 %v1193, %v1378
    %v1411 = vmul.f32 %v1197, %v1379
    %v1412 = vmul.f32 %v1199, %v1380
    %v1413 = vmul.f32 %v1201, %v1381
    %v1414 = vmul.f32 %v1203, %v1382
    %v1415 = vmul.f32 %v1207, %v1383
    %v1416 = vmul.f32 %v1209, %v1384
    %v1417 = vmul.f32 %v1211, %v1385
    %v1418 = vmul.f32 %v1213, %v1386
    %v1419 = vmul.f32 %v1217, %v1387
    %v1420 = vmul.f32 %v1219, %v1388
    %v1421 = vmul.f32 %v1221, %v1389
    %v1422 = vmul.f32 %v1223, %v1390
    %v1423 = vmul.f32 %v1227, %v1391
    %v1424 = vmul.f32 %v1229, %v1392
    %v1425 = vmul.f32 %v1231, %v1393
    %v1426 = vmul.f32 %v1233, %v1394
    %v1427 = vpack.c.bf16 %v1397, %v1395
    %v1428 = vpack.c.bf16 %v1398, %v1396
    %v1429 = vpack.c.bf16 %v1401, %v1399
    %v1430 = vpack.c.bf16 %v1402, %v1400
    %v1431 = vpack.c.bf16 %v1405, %v1403
    %v1432 = vpack.c.bf16 %v1406, %v1404
    %v1433 = vpack.c.bf16 %v1409, %v1407
    %v1434 = vpack.c.bf16 %v1410, %v1408
    %v1435 = vpack.c.bf16 %v1413, %v1411
    %v1436 = vpack.c.bf16 %v1414, %v1412
    %v1437 = vpack.c.bf16 %v1417, %v1415
    %v1438 = vpack.c.bf16 %v1418, %v1416
    %v1439 = vpack.c.bf16 %v1421, %v1419
    %v1440 = vpack.c.bf16 %v1422, %v1420
    %v1441 = vpack.c.bf16 %v1425, %v1423
    %v1442 = vpack.c.bf16 %v1426, %v1424
    %v1443 = vld [vmem:[%s4] sm:$0xf]
    %v1444 = vld [vmem:[%s4 + $0x4] sm:$0xf]
    %v1445 = vld [vmem:[%s4 + $0x8] sm:$0xf]
    %v1446 = vld [vmem:[%s4 + $0xc] sm:$0xf]
    %v1447 = vld [vmem:[%s4 + $0x10] sm:$0xf]
    %v1448 = vld [vmem:[%s4 + $0x14] sm:$0xf]
    %v1449 = vld [vmem:[%s4 + $0x18] sm:$0xf]
    %v1450 = vld [vmem:[%s4 + $0x1c] sm:$0xf]
    %v1451 = vld [vmem:[%s4 + $0x20] sm:$0xf]
    %v1452 = vld [vmem:[%s4 + $0x24] sm:$0xf]
    %v1453 = vld [vmem:[%s4 + $0x28] sm:$0xf]
    %v1454 = vld [vmem:[%s4 + $0x2c] sm:$0xf]
    %v1455 = vld [vmem:[%s4 + $0x30] sm:$0xf]
    %v1456 = vld [vmem:[%s4 + $0x34] sm:$0xf]
    %v1457 = vld [vmem:[%s4 + $0x38] sm:$0xf]
    %v1458 = vld [vmem:[%s4 + $0x3c] sm:$0xf]
    %v1459 = vld [vmem:[%s4 + $0x40] sm:$0xf]
    %v1460 = vld [vmem:[%s4 + $0x44] sm:$0xf]
    %v1461 = vld [vmem:[%s4 + $0x48] sm:$0xf]
    %v1462 = vld [vmem:[%s4 + $0x4c] sm:$0xf]
    %v1463 = vld [vmem:[%s4 + $0x50] sm:$0xf]
    %v1464 = vld [vmem:[%s4 + $0x54] sm:$0xf]
    %v1465 = vld [vmem:[%s4 + $0x58] sm:$0xf]
    %v1466 = vld [vmem:[%s4 + $0x5c] sm:$0xf]
    %v1467 = vld [vmem:[%s4 + $0x60] sm:$0xf]
    %v1468 = vld [vmem:[%s4 + $0x64] sm:$0xf]
    %v1469 = vld [vmem:[%s4 + $0x68] sm:$0xf]
    %v1470 = vld [vmem:[%s4 + $0x6c] sm:$0xf]
    %v1471 = vld [vmem:[%s4 + $0x70] sm:$0xf]
    %v1472 = vld [vmem:[%s4 + $0x74] sm:$0xf]
    %v1473 = vld [vmem:[%s4 + $0x78] sm:$0xf]
    %v1474 = vld [vmem:[%s4 + $0x7c] sm:$0xf]
    %v1507 = vunpack.c.l.b16 %v1443
    %v1508 = vunpack.c.l.b16 %v1444
    %v1509 = vunpack.c.l.b16 %v1445
    %v1510 = vunpack.c.l.b16 %v1446
    %v1511 = vunpack.c.l.b16 %v1447
    %v1512 = vunpack.c.l.b16 %v1448
    %v1513 = vunpack.c.l.b16 %v1449
    %v1514 = vunpack.c.l.b16 %v1450
    %v1515 = vunpack.c.l.b16 %v1451
    %v1516 = vunpack.c.l.b16 %v1452
    %v1517 = vunpack.c.l.b16 %v1453
    %v1518 = vunpack.c.l.b16 %v1454
    %v1519 = vunpack.c.l.b16 %v1455
    %v1520 = vunpack.c.l.b16 %v1456
    %v1521 = vunpack.c.l.b16 %v1457
    %v1522 = vunpack.c.l.b16 %v1458
    %v1523 = vunpack.c.l.b16 %v1459
    %v1524 = vunpack.c.l.b16 %v1460
    %v1525 = vunpack.c.l.b16 %v1461
    %v1526 = vunpack.c.l.b16 %v1462
    %v1527 = vunpack.c.l.b16 %v1463
    %v1528 = vunpack.c.l.b16 %v1464
    %v1529 = vunpack.c.l.b16 %v1465
    %v1530 = vunpack.c.l.b16 %v1466
    %v1531 = vunpack.c.l.b16 %v1467
    %v1532 = vunpack.c.l.b16 %v1468
    %v1533 = vunpack.c.l.b16 %v1469
    %v1534 = vunpack.c.l.b16 %v1470
    %v1535 = vunpack.c.l.b16 %v1471
    %v1536 = vunpack.c.l.b16 %v1472
    %v1537 = vunpack.c.l.b16 %v1473
    %v1538 = vunpack.c.l.b16 %v1474
    %v1539 = vpack.c.b16 %v1508, %v1507
    %v1540 = vpack.c.b16 %v1510, %v1509
    %v1541 = vpack.c.b16 %v1512, %v1511
    %v1542 = vpack.c.b16 %v1514, %v1513
    %v1543 = vpack.c.b16 %v1516, %v1515
    %v1544 = vpack.c.b16 %v1518, %v1517
    %v1545 = vpack.c.b16 %v1520, %v1519
    %v1546 = vpack.c.b16 %v1522, %v1521
    %v1547 = vpack.c.b16 %v1524, %v1523
    %v1548 = vpack.c.b16 %v1526, %v1525
    %v1549 = vpack.c.b16 %v1528, %v1527
    %v1550 = vpack.c.b16 %v1530, %v1529
    %v1551 = vpack.c.b16 %v1532, %v1531
    %v1552 = vpack.c.b16 %v1534, %v1533
    %v1553 = vpack.c.b16 %v1536, %v1535
    %v1554 = vpack.c.b16 %v1538, %v1537
    %1571 = vmatprep.subr.bf16.mxu0 0
    %1572 = vmatpush1.bf16.msra.mxu0 %v1546
    %1573 = vmatprep.subr.bf16.mxu0 0
    %1574 = vmatpush1.bf16.msra.mxu0 %v1545
    %1575 = vmatprep.subr.bf16.mxu0 0
    %1576 = vmatpush1.bf16.msra.mxu0 %v1544
    %1577 = vmatprep.subr.bf16.mxu0 0
    %1578 = vmatpush1.bf16.msra.mxu0 %v1543
    %1579 = vmatprep.subr.bf16.mxu0 0
    %1580 = vmatpush1.bf16.msra.mxu0 %v1542
    %1581 = vmatprep.subr.bf16.mxu0 0
    %1582 = vmatpush1.bf16.msra.mxu0 %v1541
    %1583 = vmatprep.subr.bf16.mxu0 0
    %1584 = vmatpush1.bf16.msra.mxu0 %v1540
    %1585 = vmatprep.subr.bf16.mxu0 0
    %1586 = vmatpush1.bf16.msra.mxu0 %v1539
    %1587 = vmatprep.subr.bf16.mxu0 0
    %1588 = vmatpush2.bf16.msra.mxu0 %v1554
    %1589 = vmatprep.subr.bf16.mxu0 0
    %1590 = vmatpush2.bf16.msra.mxu0 %v1553
    %1591 = vmatprep.subr.bf16.mxu0 0
    %1592 = vmatpush2.bf16.msra.mxu0 %v1552
    %1593 = vmatprep.subr.bf16.mxu0 0
    %1594 = vmatpush2.bf16.msra.mxu0 %v1551
    %1595 = vmatprep.subr.bf16.mxu0 0
    %1596 = vmatpush2.bf16.msra.mxu0 %v1550
    %1597 = vmatprep.subr.bf16.mxu0 0
    %1598 = vmatpush2.bf16.msra.mxu0 %v1549
    %1599 = vmatprep.subr.bf16.mxu0 0
    %1600 = vmatpush2.bf16.msra.mxu0 %v1548
    %1601 = vmatprep.subr.bf16.mxu0 0
    %1602 = vmatpush2.bf16.msra.mxu0 %v1547
    %1603 = vmatprep.mubr.bf16.mxu0 %v1428
    %1604 = vmatmul.mubr.bf16.gmra.mxu0 %v1427
    %v1605 = vpop.f32.mrf.mxu0
    %v1606 = vadd.f32 0.0, %v1605
    %v1607 = vpop.f32.mrf.mxu0
    %v1608 = vpop.f32.mrf.mxu0
    %v1609 = vadd.f32 0.0, %v1608
    %v1610 = vpop.f32.mrf.mxu0
    %1611 = vmatprep.mubr.bf16.mxu0 %v1430
    %1612 = vmatmul.mubr.bf16.gmra.mxu0 %v1429
    %v1613 = vpop.f32.mrf.mxu0
    %v1614 = vadd.f32 0.0, %v1613
    %v1615 = vpop.f32.mrf.mxu0
    %v1616 = vpop.f32.mrf.mxu0
    %v1617 = vadd.f32 0.0, %v1616
    %v1618 = vpop.f32.mrf.mxu0
    %1619 = vmatprep.mubr.bf16.mxu0 %v1432
    %1620 = vmatmul.mubr.bf16.gmra.mxu0 %v1431
    %v1621 = vpop.f32.mrf.mxu0
    %v1622 = vadd.f32 0.0, %v1621
    %v1623 = vpop.f32.mrf.mxu0
    %v1624 = vpop.f32.mrf.mxu0
    %v1625 = vadd.f32 0.0, %v1624
    %v1626 = vpop.f32.mrf.mxu0
    %1627 = vmatprep.mubr.bf16.mxu0 %v1434
    %1628 = vmatmul.mubr.bf16.gmra.mxu0 %v1433
    %v1629 = vpop.f32.mrf.mxu0
    %v1630 = vadd.f32 0.0, %v1629
    %v1631 = vpop.f32.mrf.mxu0
    %v1632 = vpop.f32.mrf.mxu0
    %v1633 = vadd.f32 0.0, %v1632
    %v1634 = vpop.f32.mrf.mxu0
    %1635 = vmatprep.mubr.bf16.mxu0 %v1436
    %1636 = vmatmul.mubr.bf16.gmra.mxu0 %v1435
    %v1637 = vpop.f32.mrf.mxu0
    %v1638 = vadd.f32 0.0, %v1637
    %v1639 = vpop.f32.mrf.mxu0
    %v1640 = vpop.f32.mrf.mxu0
    %v1641 = vadd.f32 0.0, %v1640
    %v1642 = vpop.f32.mrf.mxu0
    %1643 = vmatprep.mubr.bf16.mxu0 %v1438
    %1644 = vmatmul.mubr.bf16.gmra.mxu0 %v1437
    %v1645 = vpop.f32.mrf.mxu0
    %v1646 = vadd.f32 0.0, %v1645
    %v1647 = vpop.f32.mrf.mxu0
    %v1648 = vpop.f32.mrf.mxu0
    %v1649 = vadd.f32 0.0, %v1648
    %v1650 = vpop.f32.mrf.mxu0
    %1651 = vmatprep.mubr.bf16.mxu0 %v1440
    %1652 = vmatmul.mubr.bf16.gmra.mxu0 %v1439
    %v1653 = vpop.f32.mrf.mxu0
    %v1654 = vadd.f32 0.0, %v1653
    %v1655 = vpop.f32.mrf.mxu0
    %v1656 = vpop.f32.mrf.mxu0
    %v1657 = vadd.f32 0.0, %v1656
    %v1658 = vpop.f32.mrf.mxu0
    %1659 = vmatprep.mubr.bf16.mxu0 %v1442
    %1660 = vmatmul.mubr.bf16.gmra.mxu0 %v1441
    %v1661 = vpop.f32.mrf.mxu0
    %v1662 = vadd.f32 0.0, %v1661
    %v1663 = vpop.f32.mrf.mxu0
    %v1664 = vpop.f32.mrf.mxu0
    %v1665 = vadd.f32 0.0, %v1664
    %v1666 = vpop.f32.mrf.mxu0
    %1667 = vdwg.mxu0
    %vm1668 = vcmask 64512
    %1669 = vst.msk [vmem:[%s5] sm:$0xff] %vm1668, %v1606
    %1670 = vst.msk [vmem:[%s5 + $0x8] sm:$0xff] %vm1668, %v1609
    %1671 = vst.msk [vmem:[%s5 + $0x10] sm:$0xff] %vm1668, %v1614
    %1672 = vst.msk [vmem:[%s5 + $0x18] sm:$0xff] %vm1668, %v1617
    %1673 = vst.msk [vmem:[%s5 + $0x20] sm:$0xff] %vm1668, %v1622
    %1674 = vst.msk [vmem:[%s5 + $0x28] sm:$0xff] %vm1668, %v1625
    %1675 = vst.msk [vmem:[%s5 + $0x30] sm:$0xff] %vm1668, %v1630
    %1676 = vst.msk [vmem:[%s5 + $0x38] sm:$0xff] %vm1668, %v1633
    %1677 = vst.msk [vmem:[%s5 + $0x40] sm:$0xff] %vm1668, %v1638
    %1678 = vst.msk [vmem:[%s5 + $0x48] sm:$0xff] %vm1668, %v1641
    %1679 = vst.msk [vmem:[%s5 + $0x50] sm:$0xff] %vm1668, %v1646
    %1680 = vst.msk [vmem:[%s5 + $0x58] sm:$0xff] %vm1668, %v1649
    %1681 = vst.msk [vmem:[%s5 + $0x60] sm:$0xff] %vm1668, %v1654
    %1682 = vst.msk [vmem:[%s5 + $0x68] sm:$0xff] %vm1668, %v1657
    %1683 = vst.msk [vmem:[%s5 + $0x70] sm:$0xff] %vm1668, %v1662
    %1684 = vst.msk [vmem:[%s5 + $0x78] sm:$0xff] %vm1668, %v1665
    // Predicated region
    $region26: #{tpu_custom_call.1} parent=1 // pred_check
      _
    $region27: #{tpu_custom_call.1} parent=1 // pred_check_branch
      %1686 = sbr.rel (0) target = $region29
    $region28: #{tpu_custom_call.1} parent=1 // pred_region
      _
    $region29: #{tpu_custom_call.1} parent=1 // pred_fallthru
      _
    // Predicated region
    $region30: #{tpu_custom_call.1} parent=1 // pred_check
      _
    $region31: #{tpu_custom_call.1} parent=1 // pred_check_branch
      %1688 = sbr.rel (0) target = $region33
    $region32: #{tpu_custom_call.1} parent=1 // pred_region
      _
    $region33: #{tpu_custom_call.1} parent=1 // pred_fallthru
      _
    %1689 = vsyncpa [#allocation3], 1

// kernel: tpu_custom_call.1
$region0: #{tpu_custom_call.1}
  #allocation0 [shape = 'u32[]', space=smem, size = 0x4, offset = 0x4, fixed_abs, tag = 'smem constant byte address 0x4 - core index']
  #allocation1 [shape = 'u32[144,128]{1,0:T(1,128)}', space=vmem, size = 0x12000, scoped, tag = 'internal scratch']
  %s0 = inlined_call_operand.vmem [shape: f32[128,16], index: 0, kind: input, shape index: {}]
  %s1 = inlined_call_operand.vmem [shape: bf16[16,256], index: 1, kind: input, shape index: {}]
  %s2 = inlined_call_operand.vmem [shape: bf16[256,256], index: 2, kind: input, shape index: {}]
  %s3 = inlined_call_operand.hbm [shape: bf16[256,256], index: 3, kind: input, shape index: {}]
  %s4 = inlined_call_operand.vmem [shape: bf16[256,8], index: 4, kind: input, shape index: {}]
  %s5 = inlined_call_operand.vmem [shape: f32[128,8], index: 5, kind: output, shape index: {}]
  %s6 = sld [smem:[#allocation0]]
  $region34: #{tpu_custom_call.1} parent=0
    _
  %s8 = ssub.s32 1, %s6
  %s9 = scalar_select 0, %s8, %s6
  $region1: #{tpu_custom_call.1} parent=0
    #allocation2 [shape = 'u8[131072]{0}', space=vmem, size = 0x20000, scoped, tag = 'input window, operand 3, single buffered']
    #allocation3 [shape = 's32[1]{0}', space=sflag, size = 0x4, scoped, tag = 'scoped memory for tpu_custom_call.1']
    %10 = vsyncpa [#allocation3], 0
    // Predicated region
    $region2: #{tpu_custom_call.1} parent=1 // pred_check
      _
    $region3: #{tpu_custom_call.1} parent=1 // pred_check_branch
      %12 = sbr.rel (0) target = $region5
    $region4: #{tpu_custom_call.1} parent=1 // pred_region
      _
    $region5: #{tpu_custom_call.1} parent=1 // pred_fallthru
      _
    // Predicated region
    $region6: #{tpu_custom_call.1} parent=1 // pred_check
      _
    $region7: #{tpu_custom_call.1} parent=1 // pred_check_branch
      %14 = sbr.rel (0) target = $region9
    $region8: #{tpu_custom_call.1} parent=1 // pred_region
      _
    $region9: #{tpu_custom_call.1} parent=1 // pred_fallthru
      _
    // Predicated region
    $region10: #{tpu_custom_call.1} parent=1 // pred_check
      _
    $region11: #{tpu_custom_call.1} parent=1 // pred_check_branch
      %16 = sbr.rel (0) target = $region13
    $region12: #{tpu_custom_call.1} parent=1 // pred_region
      _
    $region13: #{tpu_custom_call.1} parent=1 // pred_fallthru
      _
    // Predicated region
    $region14: #{tpu_custom_call.1} parent=1 // pred_check
      _
    $region15: #{tpu_custom_call.1} parent=1 // pred_check_branch
      %18 = sbr.rel (0) target = $region17
    $region16: #{tpu_custom_call.1} parent=1 // pred_region
      %s20 = ssub.s32 4096, 4096
      %21 = vsyncadd [#allocation3], %s20
      %s22 = sshll.u32 [#allocation2], 4
      %s23 = int_to_ptr.vmem [resolvable:$true] %s22
      %28 = dma.hbm_to_vmem [thread:$0]  %s3, 4096, %s23, [#allocation3], 128, 128, 8
    $region17: #{tpu_custom_call.1} parent=1 // pred_fallthru
      _
    // Predicated region
    $region18: #{tpu_custom_call.1} parent=1 // pred_check
      _
    $region19: #{tpu_custom_call.1} parent=1 // pred_check_branch
      %30 = sbr.rel (0) target = $region21
    $region20: #{tpu_custom_call.1} parent=1 // pred_region
      _
    $region21: #{tpu_custom_call.1} parent=1 // pred_fallthru
      _
    // Predicated region
    $region22: #{tpu_custom_call.1} parent=1 // pred_check
      _
    $region23: #{tpu_custom_call.1} parent=1 // pred_check_branch
      %32 = sbr.rel (0) target = $region25
    $region24: #{tpu_custom_call.1} parent=1 // pred_region
      %33 = dma.done [#allocation3], 4096
    $region25: #{tpu_custom_call.1} parent=1 // pred_fallthru
      _
    %v35 = vld [vmem:[%s0] sm:$0xff]
    %v36 = vld [vmem:[%s0 + $0x8] sm:$0xff]
    %v37 = vld [vmem:[%s0 + $0x10] sm:$0xff]
    %v38 = vld [vmem:[%s0 + $0x18] sm:$0xff]
    %v39 = vld [vmem:[%s0 + $0x20] sm:$0xff]
    %v40 = vld [vmem:[%s0 + $0x28] sm:$0xff]
    %v41 = vld [vmem:[%s0 + $0x30] sm:$0xff]
    %v42 = vld [vmem:[%s0 + $0x38] sm:$0xff]
    %v43 = vld [vmem:[%s0 + $0x40] sm:$0xff]
    %v44 = vld [vmem:[%s0 + $0x48] sm:$0xff]
    %v45 = vld [vmem:[%s0 + $0x50] sm:$0xff]
    %v46 = vld [vmem:[%s0 + $0x58] sm:$0xff]
    %v47 = vld [vmem:[%s0 + $0x60] sm:$0xff]
    %v48 = vld [vmem:[%s0 + $0x68] sm:$0xff]
    %v49 = vld [vmem:[%s0 + $0x70] sm:$0xff]
    %v50 = vld [vmem:[%s0 + $0x78] sm:$0xff]
    %v51 = vpack.c.bf16 %v36, %v35
    %v52 = vpack.c.bf16 %v38, %v37
    %v53 = vpack.c.bf16 %v40, %v39
    %v54 = vpack.c.bf16 %v42, %v41
    %v55 = vpack.c.bf16 %v44, %v43
    %v56 = vpack.c.bf16 %v46, %v45
    %v57 = vpack.c.bf16 %v48, %v47
    %v58 = vpack.c.bf16 %v50, %v49
    %v59 = vld [vmem:[%s1] sm:$0xff]
    %v60 = vld [vmem:[%s1 + $0x8] sm:$0xff]
    %v63 = vunpack.c.l.b16 %v59
    %v64 = vunpack.c.h.b16 %v59
    %v65 = vunpack.c.l.b16 %v60
    %v66 = vunpack.c.h.b16 %v60
    %v67 = vpack.c.b16 %v65, %v63
    %v68 = vpack.c.b16 %v66, %v64
    %vm71 = vcmask 130048
    %v73 = vsel %vm71, %v51, 0
    %v76 = vsel %vm71, %v52, 0
    %v79 = vsel %vm71, %v53, 0
    %v82 = vsel %vm71, %v54, 0
    %v85 = vsel %vm71, %v55, 0
    %v88 = vsel %vm71, %v56, 0
    %v91 = vsel %vm71, %v57, 0
    %v94 = vsel %vm71, %v58, 0
    %96 = vmatprep.subr.bf16.mxu0 0
    %97 = vmatpush1.bf16.msra.mxu0 0
    %98 = vmatprep.subr.bf16.mxu0 0
    %99 = vmatpush1.bf16.msra.mxu0 0
    %100 = vmatprep.subr.bf16.mxu0 0
    %101 = vmatpush1.bf16.msra.mxu0 0
    %102 = vmatprep.subr.bf16.mxu0 0
    %103 = vmatpush1.bf16.msra.mxu0 0
    %104 = vmatprep.subr.bf16.mxu0 0
    %105 = vmatpush1.bf16.msra.mxu0 0
    %106 = vmatprep.subr.bf16.mxu0 0
    %107 = vmatpush1.bf16.msra.mxu0 0
    %108 = vmatprep.subr.bf16.mxu0 0
    %109 = vmatpush1.bf16.msra.mxu0 0
    %110 = vmatprep.subr.bf16.mxu0 %v68
    %111 = vmatpush1.bf16.msra.mxu0 %v67
    %112 = vmatprep.subr.bf16.mxu0 0
    %113 = vmatpush2.bf16.msra.mxu0 0
    %114 = vmatprep.subr.bf16.mxu0 0
    %115 = vmatpush2.bf16.msra.mxu0 0
    %116 = vmatprep.subr.bf16.mxu0 0
    %117 = vmatpush2.bf16.msra.mxu0 0
    %118 = vmatprep.subr.bf16.mxu0 0
    %119 = vmatpush2.bf16.msra.mxu0 0
    %120 = vmatprep.subr.bf16.mxu0 0
    %121 = vmatpush2.bf16.msra.mxu0 0
    %122 = vmatprep.subr.bf16.mxu0 0
    %123 = vmatpush2.bf16.msra.mxu0 0
    %124 = vmatprep.subr.bf16.mxu0 0
    %125 = vmatpush2.bf16.msra.mxu0 0
    %126 = vmatprep.subr.bf16.mxu0 0
    %127 = vmatpush2.bf16.msra.mxu0 0
    %128 = vmatprep.mubr.bf16.mxu0 0
    %129 = vmatmul.mubr.bf16.gmra.mxu0 %v73
    %v130 = vpop.f32.mrf.mxu0
    %v131 = vadd.f32 0.0, %v130
    %v132 = vpop.f32.mrf.mxu0
    %v133 = vadd.f32 0.0, %v132
    %v134 = vpop.f32.mrf.mxu0
    %v135 = vadd.f32 0.0, %v134
    %v136 = vpop.f32.mrf.mxu0
    %v137 = vadd.f32 0.0, %v136
    %138 = vmatprep.mubr.bf16.mxu0 0
    %139 = vmatmul.mubr.bf16.gmra.mxu0 %v76
    %v140 = vpop.f32.mrf.mxu0
    %v141 = vadd.f32 0.0, %v140
    %v142 = vpop.f32.mrf.mxu0
    %v143 = vadd.f32 0.0, %v142
    %v144 = vpop.f32.mrf.mxu0
    %v145 = vadd.f32 0.0, %v144
    %v146 = vpop.f32.mrf.mxu0
    %v147 = vadd.f32 0.0, %v146
    %148 = vmatprep.mubr.bf16.mxu0 0
    %149 = vmatmul.mubr.bf16.gmra.mxu0 %v79
    %v150 = vpop.f32.mrf.mxu0
    %v151 = vadd.f32 0.0, %v150
    %v152 = vpop.f32.mrf.mxu0
    %v153 = vadd.f32 0.0, %v152
    %v154 = vpop.f32.mrf.mxu0
    %v155 = vadd.f32 0.0, %v154
    %v156 = vpop.f32.mrf.mxu0
    %v157 = vadd.f32 0.0, %v156
    %158 = vmatprep.mubr.bf16.mxu0 0
    %159 = vmatmul.mubr.bf16.gmra.mxu0 %v82
    %v160 = vpop.f32.mrf.mxu0
    %v161 = vadd.f32 0.0, %v160
    %v162 = vpop.f32.mrf.mxu0
    %v163 = vadd.f32 0.0, %v162
    %v164 = vpop.f32.mrf.mxu0
    %v165 = vadd.f32 0.0, %v164
    %v166 = vpop.f32.mrf.mxu0
    %v167 = vadd.f32 0.0, %v166
    %168 = vmatprep.mubr.bf16.mxu0 0
    %169 = vmatmul.mubr.bf16.gmra.mxu0 %v85
    %v170 = vpop.f32.mrf.mxu0
    %v171 = vadd.f32 0.0, %v170
    %v172 = vpop.f32.mrf.mxu0
    %v173 = vadd.f32 0.0, %v172
    %v174 = vpop.f32.mrf.mxu0
    %v175 = vadd.f32 0.0, %v174
    %v176 = vpop.f32.mrf.mxu0
    %v177 = vadd.f32 0.0, %v176
    %178 = vmatprep.mubr.bf16.mxu0 0
    %179 = vmatmul.mubr.bf16.gmra.mxu0 %v88
    %v180 = vpop.f32.mrf.mxu0
    %v181 = vadd.f32 0.0, %v180
    %v182 = vpop.f32.mrf.mxu0
    %v183 = vadd.f32 0.0, %v182
    %v184 = vpop.f32.mrf.mxu0
    %v185 = vadd.f32 0.0, %v184
    %v186 = vpop.f32.mrf.mxu0
    %v187 = vadd.f32 0.0, %v186
    %188 = vmatprep.mubr.bf16.mxu0 0
    %189 = vmatmul.mubr.bf16.gmra.mxu0 %v91
    %v190 = vpop.f32.mrf.mxu0
    %v191 = vadd.f32 0.0, %v190
    %v192 = vpop.f32.mrf.mxu0
    %v193 = vadd.f32 0.0, %v192
    %v194 = vpop.f32.mrf.mxu0
    %v195 = vadd.f32 0.0, %v194
    %v196 = vpop.f32.mrf.mxu0
    %v197 = vadd.f32 0.0, %v196
    %198 = vmatprep.mubr.bf16.mxu0 0
    %199 = vmatmul.mubr.bf16.gmra.mxu0 %v94
    %v200 = vpop.f32.mrf.mxu0
    %v201 = vadd.f32 0.0, %v200
    %v202 = vpop.f32.mrf.mxu0
    %v203 = vadd.f32 0.0, %v202
    %v204 = vpop.f32.mrf.mxu0
    %v205 = vadd.f32 0.0, %v204
    %v206 = vpop.f32.mrf.mxu0
    %v207 = vadd.f32 0.0, %v206
    %208 = vdwg.mxu0
    %v209 = vsub.f32 0.0, %v131
    %v210 = vsub.f32 0.0, %v133
    %v211 = vsub.f32 0.0, %v135
    %v212 = vsub.f32 0.0, %v137
    %v213 = vsub.f32 0.0, %v141
    %v214 = vsub.f32 0.0, %v143
    %v215 = vsub.f32 0.0, %v145
    %v216 = vsub.f32 0.0, %v147
    %v217 = vsub.f32 0.0, %v151
    %v218 = vsub.f32 0.0, %v153
    %v219 = vsub.f32 0.0, %v155
    %v220 = vsub.f32 0.0, %v157
    %v221 = vsub.f32 0.0, %v161
    %v222 = vsub.f32 0.0, %v163
    %v223 = vsub.f32 0.0, %v165
    %v224 = vsub.f32 0.0, %v167
    %v225 = vsub.f32 0.0, %v171
    %v226 = vsub.f32 0.0, %v173
    %v227 = vsub.f32 0.0, %v175
    %v228 = vsub.f32 0.0, %v177
    %v229 = vsub.f32 0.0, %v181
    %v230 = vsub.f32 0.0, %v183
    %v231 = vsub.f32 0.0, %v185
    %v232 = vsub.f32 0.0, %v187
    %v233 = vsub.f32 0.0, %v191
    %v234 = vsub.f32 0.0, %v193
    %v235 = vsub.f32 0.0, %v195
    %v236 = vsub.f32 0.0, %v197
    %v237 = vsub.f32 0.0, %v201
    %v238 = vsub.f32 0.0, %v203
    %v239 = vsub.f32 0.0, %v205
    %v240 = vsub.f32 0.0, %v207
    %v241 = vmul.f32 %v209, 1.442695
    %v242 = vpow.pop %v241
    %v243 = vmul.f32 %v210, 1.442695
    %v244 = vpow.pop %v243
    %v245 = vmul.f32 %v211, 1.442695
    %v246 = vpow.pop %v245
    %v247 = vmul.f32 %v212, 1.442695
    %v248 = vpow.pop %v247
    %v249 = vmul.f32 %v213, 1.442695
    %v250 = vpow.pop %v249
    %v251 = vmul.f32 %v214, 1.442695
    %v252 = vpow.pop %v251
    %v253 = vmul.f32 %v215, 1.442695
    %v254 = vpow.pop %v253
    %v255 = vmul.f32 %v216, 1.442695
    %v256 = vpow.pop %v255
    %v257 = vmul.f32 %v217, 1.442695
    %v258 = vpow.pop %v257
    %v259 = vmul.f32 %v218, 1.442695
    %v260 = vpow.pop %v259
    %v261 = vmul.f32 %v219, 1.442695
    %v262 = vpow.pop %v261
    %v263 = vmul.f32 %v220, 1.442695
    %v264 = vpow.pop %v263
    %v265 = vmul.f32 %v221, 1.442695
    %v266 = vpow.pop %v265
    %v267 = vmul.f32 %v222, 1.442695
    %v268 = vpow.pop %v267
    %v269 = vmul.f32 %v223, 1.442695
    %v270 = vpow.pop %v269
    %v271 = vmul.f32 %v224, 1.442695
    %v272 = vpow.pop %v271
    %v273 = vmul.f32 %v225, 1.442695
    %v274 = vpow.pop %v273
    %v275 = vmul.f32 %v226, 1.442695
    %v276 = vpow.pop %v275
    %v277 = vmul.f32 %v227, 1.442695
    %v278 = vpow.pop %v277
    %v279 = vmul.f32 %v228, 1.442695
    %v280 = vpow.pop %v279
    %v281 = vmul.f32 %v229, 1.442695
    %v282 = vpow.pop %v281
    %v283 = vmul.f32 %v230, 1.442695
    %v284 = vpow.pop %v283
    %v285 = vmul.f32 %v231, 1.442695
    %v286 = vpow.pop %v285
    %v287 = vmul.f32 %v232, 1.442695
    %v288 = vpow.pop %v287
    %v289 = vmul.f32 %v233, 1.442695
    %v290 = vpow.pop %v289
    %v291 = vmul.f32 %v234, 1.442695
    %v292 = vpow.pop %v291
    %v293 = vmul.f32 %v235, 1.442695
    %v294 = vpow.pop %v293
    %v295 = vmul.f32 %v236, 1.442695
    %v296 = vpow.pop %v295
    %v297 = vmul.f32 %v237, 1.442695
    %v298 = vpow.pop %v297
    %v299 = vmul.f32 %v238, 1.442695
    %v300 = vpow.pop %v299
    %v301 = vmul.f32 %v239, 1.442695
    %v302 = vpow.pop %v301
    %v303 = vmul.f32 %v240, 1.442695
    %v304 = vpow.pop %v303
    %v305 = vadd.f32 %v242, 1.0
    %v306 = vadd.f32 %v244, 1.0
    %v307 = vadd.f32 %v246, 1.0
    %v308 = vadd.f32 %v248, 1.0
    %v309 = vadd.f32 %v250, 1.0
    %v310 = vadd.f32 %v252, 1.0
    %v311 = vadd.f32 %v254, 1.0
    %v312 = vadd.f32 %v256, 1.0
    %v313 = vadd.f32 %v258, 1.0
    %v314 = vadd.f32 %v260, 1.0
    %v315 = vadd.f32 %v262, 1.0
    %v316 = vadd.f32 %v264, 1.0
    %v317 = vadd.f32 %v266, 1.0
    %v318 = vadd.f32 %v268, 1.0
    %v319 = vadd.f32 %v270, 1.0
    %v320 = vadd.f32 %v272, 1.0
    %v321 = vadd.f32 %v274, 1.0
    %v322 = vadd.f32 %v276, 1.0
    %v323 = vadd.f32 %v278, 1.0
    %v324 = vadd.f32 %v280, 1.0
    %v325 = vadd.f32 %v282, 1.0
    %v326 = vadd.f32 %v284, 1.0
    %v327 = vadd.f32 %v286, 1.0
    %v328 = vadd.f32 %v288, 1.0
    %v329 = vadd.f32 %v290, 1.0
    %v330 = vadd.f32 %v292, 1.0
    %v331 = vadd.f32 %v294, 1.0
    %v332 = vadd.f32 %v296, 1.0
    %v333 = vadd.f32 %v298, 1.0
    %v334 = vadd.f32 %v300, 1.0
    %v335 = vadd.f32 %v302, 1.0
    %v336 = vadd.f32 %v304, 1.0
    %v337 = vrcp.pop %v305
    %v338 = vrcp.pop %v306
    %v339 = vrcp.pop %v307
    %v340 = vrcp.pop %v308
    %v341 = vrcp.pop %v309
    %v342 = vrcp.pop %v310
    %v343 = vrcp.pop %v311
    %v344 = vrcp.pop %v312
    %v345 = vrcp.pop %v313
    %v346 = vrcp.pop %v314
    %v347 = vrcp.pop %v315
    %v348 = vrcp.pop %v316
    %v349 = vrcp.pop %v317
    %v350 = vrcp.pop %v318
    %v351 = vrcp.pop %v319
    %v352 = vrcp.pop %v320
    %v353 = vrcp.pop %v321
    %v354 = vrcp.pop %v322
    %v355 = vrcp.pop %v323
    %v356 = vrcp.pop %v324
    %v357 = vrcp.pop %v325
    %v358 = vrcp.pop %v326
    %v359 = vrcp.pop %v327
    %v360 = vrcp.pop %v328
    %v361 = vrcp.pop %v329
    %v362 = vrcp.pop %v330
    %v363 = vrcp.pop %v331
    %v364 = vrcp.pop %v332
    %v365 = vrcp.pop %v333
    %v366 = vrcp.pop %v334
    %v367 = vrcp.pop %v335
    %v368 = vrcp.pop %v336
    %v369 = vmul.f32 %v131, %v337
    %v370 = vmul.f32 %v133, %v338
    %v371 = vmul.f32 %v135, %v339
    %v372 = vmul.f32 %v137, %v340
    %v373 = vmul.f32 %v141, %v341
    %v374 = vmul.f32 %v143, %v342
    %v375 = vmul.f32 %v145, %v343
    %v376 = vmul.f32 %v147, %v344
    %v377 = vmul.f32 %v151, %v345
    %v378 = vmul.f32 %v153, %v346
    %v379 = vmul.f32 %v155, %v347
    %v380 = vmul.f32 %v157, %v348
    %v381 = vmul.f32 %v161, %v349
    %v382 = vmul.f32 %v163, %v350
    %v383 = vmul.f32 %v165, %v351
    %v384 = vmul.f32 %v167, %v352
    %v385 = vmul.f32 %v171, %v353
    %v386 = vmul.f32 %v173, %v354
    %v387 = vmul.f32 %v175, %v355
    %v388 = vmul.f32 %v177, %v356
    %v389 = vmul.f32 %v181, %v357
    %v390 = vmul.f32 %v183, %v358
    %v391 = vmul.f32 %v185, %v359
    %v392 = vmul.f32 %v187, %v360
    %v393 = vmul.f32 %v191, %v361
    %v394 = vmul.f32 %v193, %v362
    %v395 = vmul.f32 %v195, %v363
    %v396 = vmul.f32 %v197, %v364
    %v397 = vmul.f32 %v201, %v365
    %v398 = vmul.f32 %v203, %v366
    %v399 = vmul.f32 %v205, %v367
    %v400 = vmul.f32 %v207, %v368
    %v401 = vpack.c.bf16 %v371, %v369
    %v402 = vpack.c.bf16 %v372, %v370
    %v403 = vpack.c.bf16 %v375, %v373
    %v404 = vpack.c.bf16 %v376, %v374
    %v405 = vpack.c.bf16 %v379, %v377
    %v406 = vpack.c.bf16 %v380, %v378
    %v407 = vpack.c.bf16 %v383, %v381
    %v408 = vpack.c.bf16 %v384, %v382
    %v409 = vpack.c.bf16 %v387, %v385
    %v410 = vpack.c.bf16 %v388, %v386
    %v411 = vpack.c.bf16 %v391, %v389
    %v412 = vpack.c.bf16 %v392, %v390
    %v413 = vpack.c.bf16 %v395, %v393
    %v414 = vpack.c.bf16 %v396, %v394
    %v415 = vpack.c.bf16 %v399, %v397
    %v416 = vpack.c.bf16 %v400, %v398
    %v417 = vld [vmem:[%s2] sm:$0xff]
    %v418 = vld [vmem:[%s2 + $0x8] sm:$0xff]
    %v419 = vld [vmem:[%s2 + $0x10] sm:$0xff]
    %v420 = vld [vmem:[%s2 + $0x18] sm:$0xff]
    %v421 = vld [vmem:[%s2 + $0x20] sm:$0xff]
    %v422 = vld [vmem:[%s2 + $0x28] sm:$0xff]
    %v423 = vld [vmem:[%s2 + $0x30] sm:$0xff]
    %v424 = vld [vmem:[%s2 + $0x38] sm:$0xff]
    %v425 = vld [vmem:[%s2 + $0x40] sm:$0xff]
    %v426 = vld [vmem:[%s2 + $0x48] sm:$0xff]
    %v427 = vld [vmem:[%s2 + $0x50] sm:$0xff]
    %v428 = vld [vmem:[%s2 + $0x58] sm:$0xff]
    %v429 = vld [vmem:[%s2 + $0x60] sm:$0xff]
    %v430 = vld [vmem:[%s2 + $0x68] sm:$0xff]
    %v431 = vld [vmem:[%s2 + $0x70] sm:$0xff]
    %v432 = vld [vmem:[%s2 + $0x78] sm:$0xff]
    %v433 = vld [vmem:[%s2 + $0x80] sm:$0xff]
    %v434 = vld [vmem:[%s2 + $0x88] sm:$0xff]
    %v435 = vld [vmem:[%s2 + $0x90] sm:$0xff]
    %v436 = vld [vmem:[%s2 + $0x98] sm:$0xff]
    %v437 = vld [vmem:[%s2 + $0xa0] sm:$0xff]
    %v438 = vld [vmem:[%s2 + $0xa8] sm:$0xff]
    %v439 = vld [vmem:[%s2 + $0xb0] sm:$0xff]
    %v440 = vld [vmem:[%s2 + $0xb8] sm:$0xff]
    %v441 = vld [vmem:[%s2 + $0xc0] sm:$0xff]
    %v442 = vld [vmem:[%s2 + $0xc8] sm:$0xff]
    %v443 = vld [vmem:[%s2 + $0xd0] sm:$0xff]
    %v444 = vld [vmem:[%s2 + $0xd8] sm:$0xff]
    %v445 = vld [vmem:[%s2 + $0xe0] sm:$0xff]
    %v446 = vld [vmem:[%s2 + $0xe8] sm:$0xff]
    %v447 = vld [vmem:[%s2 + $0xf0] sm:$0xff]
    %v448 = vld [vmem:[%s2 + $0xf8] sm:$0xff]
    %v481 = vunpack.c.l.b16 %v417
    %v482 = vunpack.c.h.b16 %v417
    %v483 = vunpack.c.l.b16 %v418
    %v484 = vunpack.c.h.b16 %v418
    %v485 = vunpack.c.l.b16 %v419
    %v486 = vunpack.c.h.b16 %v419
    %v487 = vunpack.c.l.b16 %v420
    %v488 = vunpack.c.h.b16 %v420
    %v489 = vunpack.c.l.b16 %v421
    %v490 = vunpack.c.h.b16 %v421
    %v491 = vunpack.c.l.b16 %v422
    %v492 = vunpack.c.h.b16 %v422
    %v493 = vunpack.c.l.b16 %v423
    %v494 = vunpack.c.h.b16 %v423
    %v495 = vunpack.c.l.b16 %v424
    %v496 = vunpack.c.h.b16 %v424
    %v497 = vunpack.c.l.b16 %v425
    %v498 = vunpack.c.h.b16 %v425
    %v499 = vunpack.c.l.b16 %v426
    %v500 = vunpack.c.h.b16 %v426
    %v501 = vunpack.c.l.b16 %v427
    %v502 = vunpack.c.h.b16 %v427
    %v503 = vunpack.c.l.b16 %v428
    %v504 = vunpack.c.h.b16 %v428
    %v505 = vunpack.c.l.b16 %v429
    %v506 = vunpack.c.h.b16 %v429
    %v507 = vunpack.c.l.b16 %v430
    %v508 = vunpack.c.h.b16 %v430
    %v509 = vunpack.c.l.b16 %v431
    %v510 = vunpack.c.h.b16 %v431
    %v511 = vunpack.c.l.b16 %v432
    %v512 = vunpack.c.h.b16 %v432
    %v513 = vunpack.c.l.b16 %v433
    %v514 = vunpack.c.h.b16 %v433
    %v515 = vunpack.c.l.b16 %v434
    %v516 = vunpack.c.h.b16 %v434
    %v517 = vunpack.c.l.b16 %v435
    %v518 = vunpack.c.h.b16 %v435
    %v519 = vunpack.c.l.b16 %v436
    %v520 = vunpack.c.h.b16 %v436
    %v521 = vunpack.c.l.b16 %v437
    %v522 = vunpack.c.h.b16 %v437
    %v523 = vunpack.c.l.b16 %v438
    %v524 = vunpack.c.h.b16 %v438
    %v525 = vunpack.c.l.b16 %v439
    %v526 = vunpack.c.h.b16 %v439
    %v527 = vunpack.c.l.b16 %v440
    %v528 = vunpack.c.h.b16 %v440
    %v529 = vunpack.c.l.b16 %v441
    %v530 = vunpack.c.h.b16 %v441
    %v531 = vunpack.c.l.b16 %v442
    %v532 = vunpack.c.h.b16 %v442
    %v533 = vunpack.c.l.b16 %v443
    %v534 = vunpack.c.h.b16 %v443
    %v535 = vunpack.c.l.b16 %v444
    %v536 = vunpack.c.h.b16 %v444
    %v537 = vunpack.c.l.b16 %v445
    %v538 = vunpack.c.h.b16 %v445
    %v539 = vunpack.c.l.b16 %v446
    %v540 = vunpack.c.h.b16 %v446
    %v541 = vunpack.c.l.b16 %v447
    %v542 = vunpack.c.h.b16 %v447
    %v543 = vunpack.c.l.b16 %v448
    %v544 = vunpack.c.h.b16 %v448
    %v545 = vpack.c.b16 %v483, %v481
    %v546 = vpack.c.b16 %v484, %v482
    %v547 = vpack.c.b16 %v487, %v485
    %v548 = vpack.c.b16 %v488, %v486
    %v549 = vpack.c.b16 %v491, %v489
    %v550 = vpack.c.b16 %v492, %v490
    %v551 = vpack.c.b16 %v495, %v493
    %v552 = vpack.c.b16 %v496, %v494
    %v553 = vpack.c.b16 %v499, %v497
    %v554 = vpack.c.b16 %v500, %v498
    %v555 = vpack.c.b16 %v503, %v501
    %v556 = vpack.c.b16 %v504, %v502
    %v557 = vpack.c.b16 %v507, %v505
    %v558 = vpack.c.b16 %v508, %v506
    %v559 = vpack.c.b16 %v511, %v509
    %v560 = vpack.c.b16 %v512, %v510
    %v561 = vpack.c.b16 %v515, %v513
    %v562 = vpack.c.b16 %v516, %v514
    %v563 = vpack.c.b16 %v519, %v517
    %v564 = vpack.c.b16 %v520, %v518
    %v565 = vpack.c.b16 %v523, %v521
    %v566 = vpack.c.b16 %v524, %v522
    %v567 = vpack.c.b16 %v527, %v525
    %v568 = vpack.c.b16 %v528, %v526
    %v569 = vpack.c.b16 %v531, %v529
    %v570 = vpack.c.b16 %v532, %v530
    %v571 = vpack.c.b16 %v535, %v533
    %v572 = vpack.c.b16 %v536, %v534
    %v573 = vpack.c.b16 %v539, %v537
    %v574 = vpack.c.b16 %v540, %v538
    %v575 = vpack.c.b16 %v543, %v541
    %v576 = vpack.c.b16 %v544, %v542
    %609 = vmatprep.subr.bf16.mxu0 %v560
    %610 = vmatpush1.bf16.msra.mxu0 %v559
    %611 = vmatprep.subr.bf16.mxu0 %v558
    %612 = vmatpush1.bf16.msra.mxu0 %v557
    %613 = vmatprep.subr.bf16.mxu0 %v556
    %614 = vmatpush1.bf16.msra.mxu0 %v555
    %615 = vmatprep.subr.bf16.mxu0 %v554
    %616 = vmatpush1.bf16.msra.mxu0 %v553
    %617 = vmatprep.subr.bf16.mxu0 %v552
    %618 = vmatpush1.bf16.msra.mxu0 %v551
    %619 = vmatprep.subr.bf16.mxu0 %v550
    %620 = vmatpush1.bf16.msra.mxu0 %v549
    %621 = vmatprep.subr.bf16.mxu0 %v548
    %622 = vmatpush1.bf16.msra.mxu0 %v547
    %623 = vmatprep.subr.bf16.mxu0 %v546
    %624 = vmatpush1.bf16.msra.mxu0 %v545
    %625 = vmatprep.subr.bf16.mxu0 %v576
    %626 = vmatpush2.bf16.msra.mxu0 %v575
    %627 = vmatprep.subr.bf16.mxu0 %v574
    %628 = vmatpush2.bf16.msra.mxu0 %v573
    %629 = vmatprep.subr.bf16.mxu0 %v572
    %630 = vmatpush2.bf16.msra.mxu0 %v571
    %631 = vmatprep.subr.bf16.mxu0 %v570
    %632 = vmatpush2.bf16.msra.mxu0 %v569
    %633 = vmatprep.subr.bf16.mxu0 %v568
    %634 = vmatpush2.bf16.msra.mxu0 %v567
    %635 = vmatprep.subr.bf16.mxu0 %v566
    %636 = vmatpush2.bf16.msra.mxu0 %v565
    %637 = vmatprep.subr.bf16.mxu0 %v564
    %638 = vmatpush2.bf16.msra.mxu0 %v563
    %639 = vmatprep.subr.bf16.mxu0 %v562
    %640 = vmatpush2.bf16.msra.mxu0 %v561
    %641 = vmatprep.mubr.bf16.mxu0 %v402
    %642 = vmatmul.mubr.bf16.gmra.mxu0 %v401
    %v643 = vpop.f32.mrf.mxu0
    %v644 = vadd.f32 0.0, %v643
    %v645 = vpop.f32.mrf.mxu0
    %v646 = vadd.f32 0.0, %v645
    %v647 = vpop.f32.mrf.mxu0
    %v648 = vadd.f32 0.0, %v647
    %v649 = vpop.f32.mrf.mxu0
    %v650 = vadd.f32 0.0, %v649
    %651 = vmatprep.mubr.bf16.mxu0 %v404
    %652 = vmatmul.mubr.bf16.gmra.mxu0 %v403
    %v653 = vpop.f32.mrf.mxu0
    %v654 = vadd.f32 0.0, %v653
    %v655 = vpop.f32.mrf.mxu0
    %v656 = vadd.f32 0.0, %v655
    %v657 = vpop.f32.mrf.mxu0
    %v658 = vadd.f32 0.0, %v657
    %v659 = vpop.f32.mrf.mxu0
    %v660 = vadd.f32 0.0, %v659
    %661 = vmatprep.mubr.bf16.mxu0 %v406
    %662 = vmatmul.mubr.bf16.gmra.mxu0 %v405
    %v663 = vpop.f32.mrf.mxu0
    %v664 = vadd.f32 0.0, %v663
    %v665 = vpop.f32.mrf.mxu0
    %v666 = vadd.f32 0.0, %v665
    %v667 = vpop.f32.mrf.mxu0
    %v668 = vadd.f32 0.0, %v667
    %v669 = vpop.f32.mrf.mxu0
    %v670 = vadd.f32 0.0, %v669
    %671 = vmatprep.mubr.bf16.mxu0 %v408
    %672 = vmatmul.mubr.bf16.gmra.mxu0 %v407
    %v673 = vpop.f32.mrf.mxu0
    %v674 = vadd.f32 0.0, %v673
    %v675 = vpop.f32.mrf.mxu0
    %v676 = vadd.f32 0.0, %v675
    %v677 = vpop.f32.mrf.mxu0
    %v678 = vadd.f32 0.0, %v677
    %v679 = vpop.f32.mrf.mxu0
    %v680 = vadd.f32 0.0, %v679
    %681 = vmatprep.mubr.bf16.mxu0 %v410
    %682 = vmatmul.mubr.bf16.gmra.mxu0 %v409
    %v683 = vpop.f32.mrf.mxu0
    %v684 = vadd.f32 0.0, %v683
    %v685 = vpop.f32.mrf.mxu0
    %v686 = vadd.f32 0.0, %v685
    %v687 = vpop.f32.mrf.mxu0
    %v688 = vadd.f32 0.0, %v687
    %v689 = vpop.f32.mrf.mxu0
    %v690 = vadd.f32 0.0, %v689
    %691 = vmatprep.mubr.bf16.mxu0 %v412
    %692 = vmatmul.mubr.bf16.gmra.mxu0 %v411
    %v693 = vpop.f32.mrf.mxu0
    %v694 = vadd.f32 0.0, %v693
    %v695 = vpop.f32.mrf.mxu0
    %v696 = vadd.f32 0.0, %v695
    %v697 = vpop.f32.mrf.mxu0
    %v698 = vadd.f32 0.0, %v697
    %v699 = vpop.f32.mrf.mxu0
    %v700 = vadd.f32 0.0, %v699
    %701 = vmatprep.mubr.bf16.mxu0 %v414
    %702 = vmatmul.mubr.bf16.gmra.mxu0 %v413
    %v703 = vpop.f32.mrf.mxu0
    %v704 = vadd.f32 0.0, %v703
    %v705 = vpop.f32.mrf.mxu0
    %v706 = vadd.f32 0.0, %v705
    %v707 = vpop.f32.mrf.mxu0
    %v708 = vadd.f32 0.0, %v707
    %v709 = vpop.f32.mrf.mxu0
    %v710 = vadd.f32 0.0, %v709
    %711 = vmatprep.mubr.bf16.mxu0 %v416
    %712 = vmatmul.mubr.bf16.gmra.mxu0 %v415
    %v713 = vpop.f32.mrf.mxu0
    %v714 = vadd.f32 0.0, %v713
    %v715 = vpop.f32.mrf.mxu0
    %v716 = vadd.f32 0.0, %v715
    %v717 = vpop.f32.mrf.mxu0
    %v718 = vadd.f32 0.0, %v717
    %v719 = vpop.f32.mrf.mxu0
    %v720 = vadd.f32 0.0, %v719
    %721 = vdwg.mxu0
    %v722 = vsub.f32 0.0, %v644
    %v723 = vsub.f32 0.0, %v646
    %v724 = vsub.f32 0.0, %v648
    %v725 = vsub.f32 0.0, %v650
    %v726 = vsub.f32 0.0, %v654
    %v727 = vsub.f32 0.0, %v656
    %v728 = vsub.f32 0.0, %v658
    %v729 = vsub.f32 0.0, %v660
    %v730 = vsub.f32 0.0, %v664
    %v731 = vsub.f32 0.0, %v666
    %v732 = vsub.f32 0.0, %v668
    %v733 = vsub.f32 0.0, %v670
    %v734 = vsub.f32 0.0, %v674
    %v735 = vsub.f32 0.0, %v676
    %v736 = vsub.f32 0.0, %v678
    %v737 = vsub.f32 0.0, %v680
    %v738 = vsub.f32 0.0, %v684
    %v739 = vsub.f32 0.0, %v686
    %v740 = vsub.f32 0.0, %v688
    %v741 = vsub.f32 0.0, %v690
    %v742 = vsub.f32 0.0, %v694
    %v743 = vsub.f32 0.0, %v696
    %v744 = vsub.f32 0.0, %v698
    %v745 = vsub.f32 0.0, %v700
    %v746 = vsub.f32 0.0, %v704
    %v747 = vsub.f32 0.0, %v706
    %v748 = vsub.f32 0.0, %v708
    %v749 = vsub.f32 0.0, %v710
    %v750 = vsub.f32 0.0, %v714
    %v751 = vsub.f32 0.0, %v716
    %v752 = vsub.f32 0.0, %v718
    %v753 = vsub.f32 0.0, %v720
    %v754 = vmul.f32 %v722, 1.442695
    %v755 = vpow.pop %v754
    %v756 = vmul.f32 %v723, 1.442695
    %v757 = vpow.pop %v756
    %v758 = vmul.f32 %v724, 1.442695
    %v759 = vpow.pop %v758
    %v760 = vmul.f32 %v725, 1.442695
    %v761 = vpow.pop %v760
    %v762 = vmul.f32 %v726, 1.442695
    %v763 = vpow.pop %v762
    %v764 = vmul.f32 %v727, 1.442695
    %v765 = vpow.pop %v764
    %v766 = vmul.f32 %v728, 1.442695
    %v767 = vpow.pop %v766
    %v768 = vmul.f32 %v729, 1.442695
    %v769 = vpow.pop %v768
    %v770 = vmul.f32 %v730, 1.442695
    %v771 = vpow.pop %v770
    %v772 = vmul.f32 %v731, 1.442695
    %v773 = vpow.pop %v772
    %v774 = vmul.f32 %v732, 1.442695
    %v775 = vpow.pop %v774
    %v776 = vmul.f32 %v733, 1.442695
    %v777 = vpow.pop %v776
    %v778 = vmul.f32 %v734, 1.442695
    %v779 = vpow.pop %v778
    %v780 = vmul.f32 %v735, 1.442695
    %v781 = vpow.pop %v780
    %v782 = vmul.f32 %v736, 1.442695
    %v783 = vpow.pop %v782
    %v784 = vmul.f32 %v737, 1.442695
    %v785 = vpow.pop %v784
    %v786 = vmul.f32 %v738, 1.442695
    %v787 = vpow.pop %v786
    %v788 = vmul.f32 %v739, 1.442695
    %v789 = vpow.pop %v788
    %v790 = vmul.f32 %v740, 1.442695
    %v791 = vpow.pop %v790
    %v792 = vmul.f32 %v741, 1.442695
    %v793 = vpow.pop %v792
    %v794 = vmul.f32 %v742, 1.442695
    %v795 = vpow.pop %v794
    %v796 = vmul.f32 %v743, 1.442695
    %v797 = vpow.pop %v796
    %v798 = vmul.f32 %v744, 1.442695
    %v799 = vpow.pop %v798
    %v800 = vmul.f32 %v745, 1.442695
    %v801 = vpow.pop %v800
    %v802 = vmul.f32 %v746, 1.442695
    %v803 = vpow.pop %v802
    %v804 = vmul.f32 %v747, 1.442695
    %v805 = vpow.pop %v804
    %v806 = vmul.f32 %v748, 1.442695
    %v807 = vpow.pop %v806
    %v808 = vmul.f32 %v749, 1.442695
    %v809 = vpow.pop %v808
    %v810 = vmul.f32 %v750, 1.442695
    %v811 = vpow.pop %v810
    %v812 = vmul.f32 %v751, 1.442695
    %v813 = vpow.pop %v812
    %v814 = vmul.f32 %v752, 1.442695
    %v815 = vpow.pop %v814
    %v816 = vmul.f32 %v753, 1.442695
    %v817 = vpow.pop %v816
    %v818 = vadd.f32 %v755, 1.0
    %v819 = vadd.f32 %v757, 1.0
    %v820 = vadd.f32 %v759, 1.0
    %v821 = vadd.f32 %v761, 1.0
    %v822 = vadd.f32 %v763, 1.0
    %v823 = vadd.f32 %v765, 1.0
    %v824 = vadd.f32 %v767, 1.0
    %v825 = vadd.f32 %v769, 1.0
    %v826 = vadd.f32 %v771, 1.0
    %v827 = vadd.f32 %v773, 1.0
    %v828 = vadd.f32 %v775, 1.0
    %v829 = vadd.f32 %v777, 1.0
    %v830 = vadd.f32 %v779, 1.0
    %v831 = vadd.f32 %v781, 1.0
    %v832 = vadd.f32 %v783, 1.0
    %v833 = vadd.f32 %v785, 1.0
    %v834 = vadd.f32 %v787, 1.0
    %v835 = vadd.f32 %v789, 1.0
    %v836 = vadd.f32 %v791, 1.0
    %v837 = vadd.f32 %v793, 1.0
    %v838 = vadd.f32 %v795, 1.0
    %v839 = vadd.f32 %v797, 1.0
    %v840 = vadd.f32 %v799, 1.0
    %v841 = vadd.f32 %v801, 1.0
    %v842 = vadd.f32 %v803, 1.0
    %v843 = vadd.f32 %v805, 1.0
    %v844 = vadd.f32 %v807, 1.0
    %v845 = vadd.f32 %v809, 1.0
    %v846 = vadd.f32 %v811, 1.0
    %v847 = vadd.f32 %v813, 1.0
    %v848 = vadd.f32 %v815, 1.0
    %v849 = vadd.f32 %v817, 1.0
    %v850 = vrcp.pop %v818
    %v851 = vrcp.pop %v819
    %v852 = vrcp.pop %v820
    %v853 = vrcp.pop %v821
    %v854 = vrcp.pop %v822
    %v855 = vrcp.pop %v823
    %v856 = vrcp.pop %v824
    %v857 = vrcp.pop %v825
    %v858 = vrcp.pop %v826
    %v859 = vrcp.pop %v827
    %v860 = vrcp.pop %v828
    %v861 = vrcp.pop %v829
    %v862 = vrcp.pop %v830
    %v863 = vrcp.pop %v831
    %v864 = vrcp.pop %v832
    %v865 = vrcp.pop %v833
    %v866 = vrcp.pop %v834
    %v867 = vrcp.pop %v835
    %v868 = vrcp.pop %v836
    %v869 = vrcp.pop %v837
    %v870 = vrcp.pop %v838
    %v871 = vrcp.pop %v839
    %v872 = vrcp.pop %v840
    %v873 = vrcp.pop %v841
    %v874 = vrcp.pop %v842
    %v875 = vrcp.pop %v843
    %v876 = vrcp.pop %v844
    %v877 = vrcp.pop %v845
    %v878 = vrcp.pop %v846
    %v879 = vrcp.pop %v847
    %v880 = vrcp.pop %v848
    %v881 = vrcp.pop %v849
    %v882 = vmul.f32 %v644, %v850
    %v883 = vmul.f32 %v646, %v851
    %v884 = vmul.f32 %v648, %v852
    %v885 = vmul.f32 %v650, %v853
    %v886 = vmul.f32 %v654, %v854
    %v887 = vmul.f32 %v656, %v855
    %v888 = vmul.f32 %v658, %v856
    %v889 = vmul.f32 %v660, %v857
    %v890 = vmul.f32 %v664, %v858
    %v891 = vmul.f32 %v666, %v859
    %v892 = vmul.f32 %v668, %v860
    %v893 = vmul.f32 %v670, %v861
    %v894 = vmul.f32 %v674, %v862
    %v895 = vmul.f32 %v676, %v863
    %v896 = vmul.f32 %v678, %v864
    %v897 = vmul.f32 %v680, %v865
    %v898 = vmul.f32 %v684, %v866
    %v899 = vmul.f32 %v686, %v867
    %v900 = vmul.f32 %v688, %v868
    %v901 = vmul.f32 %v690, %v869
    %v902 = vmul.f32 %v694, %v870
    %v903 = vmul.f32 %v696, %v871
    %v904 = vmul.f32 %v698, %v872
    %v905 = vmul.f32 %v700, %v873
    %v906 = vmul.f32 %v704, %v874
    %v907 = vmul.f32 %v706, %v875
    %v908 = vmul.f32 %v708, %v876
    %v909 = vmul.f32 %v710, %v877
    %v910 = vmul.f32 %v714, %v878
    %v911 = vmul.f32 %v716, %v879
    %v912 = vmul.f32 %v718, %v880
    %v913 = vmul.f32 %v720, %v881
    %v914 = vpack.c.bf16 %v884, %v882
    %v915 = vpack.c.bf16 %v885, %v883
    %v916 = vpack.c.bf16 %v888, %v886
    %v917 = vpack.c.bf16 %v889, %v887
    %v918 = vpack.c.bf16 %v892, %v890
    %v919 = vpack.c.bf16 %v893, %v891
    %v920 = vpack.c.bf16 %v896, %v894
    %v921 = vpack.c.bf16 %v897, %v895
    %v922 = vpack.c.bf16 %v900, %v898
    %v923 = vpack.c.bf16 %v901, %v899
    %v924 = vpack.c.bf16 %v904, %v902
    %v925 = vpack.c.bf16 %v905, %v903
    %v926 = vpack.c.bf16 %v908, %v906
    %v927 = vpack.c.bf16 %v909, %v907
    %v928 = vpack.c.bf16 %v912, %v910
    %v929 = vpack.c.bf16 %v913, %v911
    %v930 = vld [vmem:[#allocation2] sm:$0xff]
    %v931 = vld [vmem:[#allocation2 + $0x8] sm:$0xff]
    %v932 = vld [vmem:[#allocation2 + $0x10] sm:$0xff]
    %v933 = vld [vmem:[#allocation2 + $0x18] sm:$0xff]
    %v934 = vld [vmem:[#allocation2 + $0x20] sm:$0xff]
    %v935 = vld [vmem:[#allocation2 + $0x28] sm:$0xff]
    %v936 = vld [vmem:[#allocation2 + $0x30] sm:$0xff]
    %v937 = vld [vmem:[#allocation2 + $0x38] sm:$0xff]
    %v938 = vld [vmem:[#allocation2 + $0x40] sm:$0xff]
    %v939 = vld [vmem:[#allocation2 + $0x48] sm:$0xff]
    %v940 = vld [vmem:[#allocation2 + $0x50] sm:$0xff]
    %v941 = vld [vmem:[#allocation2 + $0x58] sm:$0xff]
    %v942 = vld [vmem:[#allocation2 + $0x60] sm:$0xff]
    %v943 = vld [vmem:[#allocation2 + $0x68] sm:$0xff]
    %v944 = vld [vmem:[#allocation2 + $0x70] sm:$0xff]
    %v945 = vld [vmem:[#allocation2 + $0x78] sm:$0xff]
    %v946 = vld [vmem:[#allocation2 + $0x80] sm:$0xff]
    %v947 = vld [vmem:[#allocation2 + $0x88] sm:$0xff]
    %v948 = vld [vmem:[#allocation2 + $0x90] sm:$0xff]
    %v949 = vld [vmem:[#allocation2 + $0x98] sm:$0xff]
    %v950 = vld [vmem:[#allocation2 + $0xa0] sm:$0xff]
    %v951 = vld [vmem:[#allocation2 + $0xa8] sm:$0xff]
    %v952 = vld [vmem:[#allocation2 + $0xb0] sm:$0xff]
    %v953 = vld [vmem:[#allocation2 + $0xb8] sm:$0xff]
    %v954 = vld [vmem:[#allocation2 + $0xc0] sm:$0xff]
    %v955 = vld [vmem:[#allocation2 + $0xc8] sm:$0xff]
    %v956 = vld [vmem:[#allocation2 + $0xd0] sm:$0xff]
    %v957 = vld [vmem:[#allocation2 + $0xd8] sm:$0xff]
    %v958 = vld [vmem:[#allocation2 + $0xe0] sm:$0xff]
    %v959 = vld [vmem:[#allocation2 + $0xe8] sm:$0xff]
    %v960 = vld [vmem:[#allocation2 + $0xf0] sm:$0xff]
    %v961 = vld [vmem:[#allocation2 + $0xf8] sm:$0xff]
    %v994 = vunpack.c.l.b16 %v930
    %v995 = vunpack.c.h.b16 %v930
    %v996 = vunpack.c.l.b16 %v931
    %v997 = vunpack.c.h.b16 %v931
    %v998 = vunpack.c.l.b16 %v932
    %v999 = vunpack.c.h.b16 %v932
    %v1000 = vunpack.c.l.b16 %v933
    %v1001 = vunpack.c.h.b16 %v933
    %v1002 = vunpack.c.l.b16 %v934
    %v1003 = vunpack.c.h.b16 %v934
    %v1004 = vunpack.c.l.b16 %v935
    %v1005 = vunpack.c.h.b16 %v935
    %v1006 = vunpack.c.l.b16 %v936
    %v1007 = vunpack.c.h.b16 %v936
    %v1008 = vunpack.c.l.b16 %v937
    %v1009 = vunpack.c.h.b16 %v937
    %v1010 = vunpack.c.l.b16 %v938
    %v1011 = vunpack.c.h.b16 %v938
    %v1012 = vunpack.c.l.b16 %v939
    %v1013 = vunpack.c.h.b16 %v939
    %v1014 = vunpack.c.l.b16 %v940
    %v1015 = vunpack.c.h.b16 %v940
    %v1016 = vunpack.c.l.b16 %v941
    %v1017 = vunpack.c.h.b16 %v941
    %v1018 = vunpack.c.l.b16 %v942
    %v1019 = vunpack.c.h.b16 %v942
    %v1020 = vunpack.c.l.b16 %v943
    %v1021 = vunpack.c.h.b16 %v943
    %v1022 = vunpack.c.l.b16 %v944
    %v1023 = vunpack.c.h.b16 %v944
    %v1024 = vunpack.c.l.b16 %v945
    %v1025 = vunpack.c.h.b16 %v945
    %v1026 = vunpack.c.l.b16 %v946
    %v1027 = vunpack.c.h.b16 %v946
    %v1028 = vunpack.c.l.b16 %v947
    %v1029 = vunpack.c.h.b16 %v947
    %v1030 = vunpack.c.l.b16 %v948
    %v1031 = vunpack.c.h.b16 %v948
    %v1032 = vunpack.c.l.b16 %v949
    %v1033 = vunpack.c.h.b16 %v949
    %v1034 = vunpack.c.l.b16 %v950
    %v1035 = vunpack.c.h.b16 %v950
    %v1036 = vunpack.c.l.b16 %v951
    %v1037 = vunpack.c.h.b16 %v951
    %v1038 = vunpack.c.l.b16 %v952
    %v1039 = vunpack.c.h.b16 %v952
    %v1040 = vunpack.c.l.b16 %v953
    %v1041 = vunpack.c.h.b16 %v953
    %v1042 = vunpack.c.l.b16 %v954
    %v1043 = vunpack.c.h.b16 %v954
    %v1044 = vunpack.c.l.b16 %v955
    %v1045 = vunpack.c.h.b16 %v955
    %v1046 = vunpack.c.l.b16 %v956
    %v1047 = vunpack.c.h.b16 %v956
    %v1048 = vunpack.c.l.b16 %v957
    %v1049 = vunpack.c.h.b16 %v957
    %v1050 = vunpack.c.l.b16 %v958
    %v1051 = vunpack.c.h.b16 %v958
    %v1052 = vunpack.c.l.b16 %v959
    %v1053 = vunpack.c.h.b16 %v959
    %v1054 = vunpack.c.l.b16 %v960
    %v1055 = vunpack.c.h.b16 %v960
    %v1056 = vunpack.c.l.b16 %v961
    %v1057 = vunpack.c.h.b16 %v961
    %v1058 = vpack.c.b16 %v996, %v994
    %v1059 = vpack.c.b16 %v997, %v995
    %v1060 = vpack.c.b16 %v1000, %v998
    %v1061 = vpack.c.b16 %v1001, %v999
    %v1062 = vpack.c.b16 %v1004, %v1002
    %v1063 = vpack.c.b16 %v1005, %v1003
    %v1064 = vpack.c.b16 %v1008, %v1006
    %v1065 = vpack.c.b16 %v1009, %v1007
    %v1066 = vpack.c.b16 %v1012, %v1010
    %v1067 = vpack.c.b16 %v1013, %v1011
    %v1068 = vpack.c.b16 %v1016, %v1014
    %v1069 = vpack.c.b16 %v1017, %v1015
    %v1070 = vpack.c.b16 %v1020, %v1018
    %v1071 = vpack.c.b16 %v1021, %v1019
    %v1072 = vpack.c.b16 %v1024, %v1022
    %v1073 = vpack.c.b16 %v1025, %v1023
    %v1074 = vpack.c.b16 %v1028, %v1026
    %v1075 = vpack.c.b16 %v1029, %v1027
    %v1076 = vpack.c.b16 %v1032, %v1030
    %v1077 = vpack.c.b16 %v1033, %v1031
    %v1078 = vpack.c.b16 %v1036, %v1034
    %v1079 = vpack.c.b16 %v1037, %v1035
    %v1080 = vpack.c.b16 %v1040, %v1038
    %v1081 = vpack.c.b16 %v1041, %v1039
    %v1082 = vpack.c.b16 %v1044, %v1042
    %v1083 = vpack.c.b16 %v1045, %v1043
    %v1084 = vpack.c.b16 %v1048, %v1046
    %v1085 = vpack.c.b16 %v1049, %v1047
    %v1086 = vpack.c.b16 %v1052, %v1050
    %v1087 = vpack.c.b16 %v1053, %v1051
    %v1088 = vpack.c.b16 %v1056, %v1054
    %v1089 = vpack.c.b16 %v1057, %v1055
    %1122 = vmatprep.subr.bf16.mxu0 %v1073
    %1123 = vmatpush1.bf16.msra.mxu0 %v1072
    %1124 = vmatprep.subr.bf16.mxu0 %v1071
    %1125 = vmatpush1.bf16.msra.mxu0 %v1070
    %1126 = vmatprep.subr.bf16.mxu0 %v1069
    %1127 = vmatpush1.bf16.msra.mxu0 %v1068
    %1128 = vmatprep.subr.bf16.mxu0 %v1067
    %1129 = vmatpush1.bf16.msra.mxu0 %v1066
    %1130 = vmatprep.subr.bf16.mxu0 %v1065
    %1131 = vmatpush1.bf16.msra.mxu0 %v1064
    %1132 = vmatprep.subr.bf16.mxu0 %v1063
    %1133 = vmatpush1.bf16.msra.mxu0 %v1062
    %1134 = vmatprep.subr.bf16.mxu0 %v1061
    %1135 = vmatpush1.bf16.msra.mxu0 %v1060
    %1136 = vmatprep.subr.bf16.mxu0 %v1059
    %1137 = vmatpush1.bf16.msra.mxu0 %v1058
    %1138 = vmatprep.subr.bf16.mxu0 %v1089
    %1139 = vmatpush2.bf16.msra.mxu0 %v1088
    %1140 = vmatprep.subr.bf16.mxu0 %v1087
    %1141 = vmatpush2.bf16.msra.mxu0 %v1086
    %1142 = vmatprep.subr.bf16.mxu0 %v1085
    %1143 = vmatpush2.bf16.msra.mxu0 %v1084
    %1144 = vmatprep.subr.bf16.mxu0 %v1083
    %1145 = vmatpush2.bf16.msra.mxu0 %v1082
    %1146 = vmatprep.subr.bf16.mxu0 %v1081
    %1147 = vmatpush2.bf16.msra.mxu0 %v1080
    %1148 = vmatprep.subr.bf16.mxu0 %v1079
    %1149 = vmatpush2.bf16.msra.mxu0 %v1078
    %1150 = vmatprep.subr.bf16.mxu0 %v1077
    %1151 = vmatpush2.bf16.msra.mxu0 %v1076
    %1152 = vmatprep.subr.bf16.mxu0 %v1075
    %1153 = vmatpush2.bf16.msra.mxu0 %v1074
    %1154 = vmatprep.mubr.bf16.mxu0 %v915
    %1155 = vmatmul.mubr.bf16.gmra.mxu0 %v914
    %v1156 = vpop.f32.mrf.mxu0
    %v1157 = vadd.f32 0.0, %v1156
    %v1158 = vpop.f32.mrf.mxu0
    %v1159 = vadd.f32 0.0, %v1158
    %v1160 = vpop.f32.mrf.mxu0
    %v1161 = vadd.f32 0.0, %v1160
    %v1162 = vpop.f32.mrf.mxu0
    %v1163 = vadd.f32 0.0, %v1162
    %1164 = vmatprep.mubr.bf16.mxu0 %v917
    %1165 = vmatmul.mubr.bf16.gmra.mxu0 %v916
    %v1166 = vpop.f32.mrf.mxu0
    %v1167 = vadd.f32 0.0, %v1166
    %v1168 = vpop.f32.mrf.mxu0
    %v1169 = vadd.f32 0.0, %v1168
    %v1170 = vpop.f32.mrf.mxu0
    %v1171 = vadd.f32 0.0, %v1170
    %v1172 = vpop.f32.mrf.mxu0
    %v1173 = vadd.f32 0.0, %v1172
    %1174 = vmatprep.mubr.bf16.mxu0 %v919
    %1175 = vmatmul.mubr.bf16.gmra.mxu0 %v918
    %v1176 = vpop.f32.mrf.mxu0
    %v1177 = vadd.f32 0.0, %v1176
    %v1178 = vpop.f32.mrf.mxu0
    %v1179 = vadd.f32 0.0, %v1178
    %v1180 = vpop.f32.mrf.mxu0
    %v1181 = vadd.f32 0.0, %v1180
    %v1182 = vpop.f32.mrf.mxu0
    %v1183 = vadd.f32 0.0, %v1182
    %1184 = vmatprep.mubr.bf16.mxu0 %v921
    %1185 = vmatmul.mubr.bf16.gmra.mxu0 %v920
    %v1186 = vpop.f32.mrf.mxu0
    %v1187 = vadd.f32 0.0, %v1186
    %v1188 = vpop.f32.mrf.mxu0
    %v1189 = vadd.f32 0.0, %v1188
    %v1190 = vpop.f32.mrf.mxu0
    %v1191 = vadd.f32 0.0, %v1190
    %v1192 = vpop.f32.mrf.mxu0
    %v1193 = vadd.f32 0.0, %v1192
    %1194 = vmatprep.mubr.bf16.mxu0 %v923
    %1195 = vmatmul.mubr.bf16.gmra.mxu0 %v922
    %v1196 = vpop.f32.mrf.mxu0
    %v1197 = vadd.f32 0.0, %v1196
    %v1198 = vpop.f32.mrf.mxu0
    %v1199 = vadd.f32 0.0, %v1198
    %v1200 = vpop.f32.mrf.mxu0
    %v1201 = vadd.f32 0.0, %v1200
    %v1202 = vpop.f32.mrf.mxu0
    %v1203 = vadd.f32 0.0, %v1202
    %1204 = vmatprep.mubr.bf16.mxu0 %v925
    %1205 = vmatmul.mubr.bf16.gmra.mxu0 %v924
    %v1206 = vpop.f32.mrf.mxu0
    %v1207 = vadd.f32 0.0, %v1206
    %v1208 = vpop.f32.mrf.mxu0
    %v1209 = vadd.f32 0.0, %v1208
    %v1210 = vpop.f32.mrf.mxu0
    %v1211 = vadd.f32 0.0, %v1210
    %v1212 = vpop.f32.mrf.mxu0
    %v1213 = vadd.f32 0.0, %v1212
    %1214 = vmatprep.mubr.bf16.mxu0 %v927
    %1215 = vmatmul.mubr.bf16.gmra.mxu0 %v926
    %v1216 = vpop.f32.mrf.mxu0
    %v1217 = vadd.f32 0.0, %v1216
    %v1218 = vpop.f32.mrf.mxu0
    %v1219 = vadd.f32 0.0, %v1218
    %v1220 = vpop.f32.mrf.mxu0
    %v1221 = vadd.f32 0.0, %v1220
    %v1222 = vpop.f32.mrf.mxu0
    %v1223 = vadd.f32 0.0, %v1222
    %1224 = vmatprep.mubr.bf16.mxu0 %v929
    %1225 = vmatmul.mubr.bf16.gmra.mxu0 %v928
    %v1226 = vpop.f32.mrf.mxu0
    %v1227 = vadd.f32 0.0, %v1226
    %v1228 = vpop.f32.mrf.mxu0
    %v1229 = vadd.f32 0.0, %v1228
    %v1230 = vpop.f32.mrf.mxu0
    %v1231 = vadd.f32 0.0, %v1230
    %v1232 = vpop.f32.mrf.mxu0
    %v1233 = vadd.f32 0.0, %v1232
    %1234 = vdwg.mxu0
    %v1235 = vsub.f32 0.0, %v1157
    %v1236 = vsub.f32 0.0, %v1159
    %v1237 = vsub.f32 0.0, %v1161
    %v1238 = vsub.f32 0.0, %v1163
    %v1239 = vsub.f32 0.0, %v1167
    %v1240 = vsub.f32 0.0, %v1169
    %v1241 = vsub.f32 0.0, %v1171
    %v1242 = vsub.f32 0.0, %v1173
    %v1243 = vsub.f32 0.0, %v1177
    %v1244 = vsub.f32 0.0, %v1179
    %v1245 = vsub.f32 0.0, %v1181
    %v1246 = vsub.f32 0.0, %v1183
    %v1247 = vsub.f32 0.0, %v1187
    %v1248 = vsub.f32 0.0, %v1189
    %v1249 = vsub.f32 0.0, %v1191
    %v1250 = vsub.f32 0.0, %v1193
    %v1251 = vsub.f32 0.0, %v1197
    %v1252 = vsub.f32 0.0, %v1199
    %v1253 = vsub.f32 0.0, %v1201
    %v1254 = vsub.f32 0.0, %v1203
    %v1255 = vsub.f32 0.0, %v1207
    %v1256 = vsub.f32 0.0, %v1209
    %v1257 = vsub.f32 0.0, %v1211
    %v1258 = vsub.f32 0.0, %v1213
    %v1259 = vsub.f32 0.0, %v1217
    %v1260 = vsub.f32 0.0, %v1219
    %v1261 = vsub.f32 0.0, %v1221
    %v1262 = vsub.f32 0.0, %v1223
    %v1263 = vsub.f32 0.0, %v1227
    %v1264 = vsub.f32 0.0, %v1229
    %v1265 = vsub.f32 0.0, %v1231
    %v1266 = vsub.f32 0.0, %v1233
    %v1267 = vmul.f32 %v1235, 1.442695
    %v1268 = vpow.pop %v1267
    %v1269 = vmul.f32 %v1236, 1.442695
    %v1270 = vpow.pop %v1269
    %v1271 = vmul.f32 %v1237, 1.442695
    %v1272 = vpow.pop %v1271
    %v1273 = vmul.f32 %v1238, 1.442695
    %v1274 = vpow.pop %v1273
    %v1275 = vmul.f32 %v1239, 1.442695
    %v1276 = vpow.pop %v1275
    %v1277 = vmul.f32 %v1240, 1.442695
    %v1278 = vpow.pop %v1277
    %v1279 = vmul.f32 %v1241, 1.442695
    %v1280 = vpow.pop %v1279
    %v1281 = vmul.f32 %v1242, 1.442695
    %v1282 = vpow.pop %v1281
    %v1283 = vmul.f32 %v1243, 1.442695
    %v1284 = vpow.pop %v1283
    %v1285 = vmul.f32 %v1244, 1.442695
    %v1286 = vpow.pop %v1285
    %v1287 = vmul.f32 %v1245, 1.442695
    %v1288 = vpow.pop %v1287
    %v1289 = vmul.f32 %v1246, 1.442695
    %v1290 = vpow.pop %v1289
    %v1291 = vmul.f32 %v1247, 1.442695
    %v1292 = vpow.pop %v1291
    %v1293 = vmul.f32 %v1248, 1.442695
    %v1294 = vpow.pop %v1293
    %v1295 = vmul.f32 %v1249, 1.442695
    %v1296 = vpow.pop %v1295
    %v1297 = vmul.f32 %v1250, 1.442695
    %v1298 = vpow.pop %v1297
    %v1299 = vmul.f32 %v1251, 1.442695
    %v1300 = vpow.pop %v1299
    %v1301 = vmul.f32 %v1252, 1.442695
    %v1302 = vpow.pop %v1301
    %v1303 = vmul.f32 %v1253, 1.442695
    %v1304 = vpow.pop %v1303
    %v1305 = vmul.f32 %v1254, 1.442695
    %v1306 = vpow.pop %v1305
    %v1307 = vmul.f32 %v1255, 1.442695
    %v1308 = vpow.pop %v1307
    %v1309 = vmul.f32 %v1256, 1.442695
    %v1310 = vpow.pop %v1309
    %v1311 = vmul.f32 %v1257, 1.442695
    %v1312 = vpow.pop %v1311
    %v1313 = vmul.f32 %v1258, 1.442695
    %v1314 = vpow.pop %v1313
    %v1315 = vmul.f32 %v1259, 1.442695
    %v1316 = vpow.pop %v1315
    %v1317 = vmul.f32 %v1260, 1.442695
    %v1318 = vpow.pop %v1317
    %v1319 = vmul.f32 %v1261, 1.442695
    %v1320 = vpow.pop %v1319
    %v1321 = vmul.f32 %v1262, 1.442695
    %v1322 = vpow.pop %v1321
    %v1323 = vmul.f32 %v1263, 1.442695
    %v1324 = vpow.pop %v1323
    %v1325 = vmul.f32 %v1264, 1.442695
    %v1326 = vpow.pop %v1325
    %v1327 = vmul.f32 %v1265, 1.442695
    %v1328 = vpow.pop %v1327
    %v1329 = vmul.f32 %v1266, 1.442695
    %v1330 = vpow.pop %v1329
    %v1331 = vadd.f32 %v1268, 1.0
    %v1332 = vadd.f32 %v1270, 1.0
    %v1333 = vadd.f32 %v1272, 1.0
    %v1334 = vadd.f32 %v1274, 1.0
    %v1335 = vadd.f32 %v1276, 1.0
    %v1336 = vadd.f32 %v1278, 1.0
    %v1337 = vadd.f32 %v1280, 1.0
    %v1338 = vadd.f32 %v1282, 1.0
    %v1339 = vadd.f32 %v1284, 1.0
    %v1340 = vadd.f32 %v1286, 1.0
    %v1341 = vadd.f32 %v1288, 1.0
    %v1342 = vadd.f32 %v1290, 1.0
    %v1343 = vadd.f32 %v1292, 1.0
    %v1344 = vadd.f32 %v1294, 1.0
    %v1345 = vadd.f32 %v1296, 1.0
    %v1346 = vadd.f32 %v1298, 1.0
    %v1347 = vadd.f32 %v1300, 1.0
    %v1348 = vadd.f32 %v1302, 1.0
    %v1349 = vadd.f32 %v1304, 1.0
    %v1350 = vadd.f32 %v1306, 1.0
    %v1351 = vadd.f32 %v1308, 1.0
    %v1352 = vadd.f32 %v1310, 1.0
    %v1353 = vadd.f32 %v1312, 1.0
    %v1354 = vadd.f32 %v1314, 1.0
    %v1355 = vadd.f32 %v1316, 1.0
    %v1356 = vadd.f32 %v1318, 1.0
    %v1357 = vadd.f32 %v1320, 1.0
    %v1358 = vadd.f32 %v1322, 1.0
    %v1359 = vadd.f32 %v1324, 1.0
    %v1360 = vadd.f32 %v1326, 1.0
    %v1361 = vadd.f32 %v1328, 1.0
    %v1362 = vadd.f32 %v1330, 1.0
    %v1363 = vrcp.pop %v1331
    %v1364 = vrcp.pop %v1332
    %v1365 = vrcp.pop %v1333
    %v1366 = vrcp.pop %v1334
    %v1367 = vrcp.pop %v1335
    %v1368 = vrcp.pop %v1336
    %v1369 = vrcp.pop %v1337
    %v1370 = vrcp.pop %v1338
    %v1371 = vrcp.pop %v1339
    %v1372 = vrcp.pop %v1340
    %v1373 = vrcp.pop %v1341
    %v1374 = vrcp.pop %v1342
    %v1375 = vrcp.pop %v1343
    %v1376 = vrcp.pop %v1344
    %v1377 = vrcp.pop %v1345
    %v1378 = vrcp.pop %v1346
    %v1379 = vrcp.pop %v1347
    %v1380 = vrcp.pop %v1348
    %v1381 = vrcp.pop %v1349
    %v1382 = vrcp.pop %v1350
    %v1383 = vrcp.pop %v1351
    %v1384 = vrcp.pop %v1352
    %v1385 = vrcp.pop %v1353
    %v1386 = vrcp.pop %v1354
    %v1387 = vrcp.pop %v1355
    %v1388 = vrcp.pop %v1356
    %v1389 = vrcp.pop %v1357
    %v1390 = vrcp.pop %v1358
    %v1391 = vrcp.pop %v1359
    %v1392 = vrcp.pop %v1360
    %v1393 = vrcp.pop %v1361
    %v1394 = vrcp.pop %v1362
    %v1395 = vmul.f32 %v1157, %v1363
    %v1396 = vmul.f32 %v1159, %v1364
    %v1397 = vmul.f32 %v1161, %v1365
    %v1398 = vmul.f32 %v1163, %v1366
    %v1399 = vmul.f32 %v1167, %v1367
    %v1400 = vmul.f32 %v1169, %v1368
    %v1401 = vmul.f32 %v1171, %v1369
    %v1402 = vmul.f32 %v1173, %v1370
    %v1403 = vmul.f32 %v1177, %v1371
    %v1404 = vmul.f32 %v1179, %v1372
    %v1405 = vmul.f32 %v1181, %v1373
    %v1406 = vmul.f32 %v1183, %v1374
    %v1407 = vmul.f32 %v1187, %v1375
    %v1408 = vmul.f32 %v1189, %v1376
    %v1409 = vmul.f32 %v1191, %v1377
    %v1410 = vmul.f32 %v1193, %v1378
    %v1411 = vmul.f32 %v1197, %v1379
    %v1412 = vmul.f32 %v1199, %v1380
    %v1413 = vmul.f32 %v1201, %v1381
    %v1414 = vmul.f32 %v1203, %v1382
    %v1415 = vmul.f32 %v1207, %v1383
    %v1416 = vmul.f32 %v1209, %v1384
    %v1417 = vmul.f32 %v1211, %v1385
    %v1418 = vmul.f32 %v1213, %v1386
    %v1419 = vmul.f32 %v1217, %v1387
    %v1420 = vmul.f32 %v1219, %v1388
    %v1421 = vmul.f32 %v1221, %v1389
    %v1422 = vmul.f32 %v1223, %v1390
    %v1423 = vmul.f32 %v1227, %v1391
    %v1424 = vmul.f32 %v1229, %v1392
    %v1425 = vmul.f32 %v1231, %v1393
    %v1426 = vmul.f32 %v1233, %v1394
    %v1427 = vpack.c.bf16 %v1397, %v1395
    %v1428 = vpack.c.bf16 %v1398, %v1396
    %v1429 = vpack.c.bf16 %v1401, %v1399
    %v1430 = vpack.c.bf16 %v1402, %v1400
    %v1431 = vpack.c.bf16 %v1405, %v1403
    %v1432 = vpack.c.bf16 %v1406, %v1404
    %v1433 = vpack.c.bf16 %v1409, %v1407
    %v1434 = vpack.c.bf16 %v1410, %v1408
    %v1435 = vpack.c.bf16 %v1413, %v1411
    %v1436 = vpack.c.bf16 %v1414, %v1412
    %v1437 = vpack.c.bf16 %v1417, %v1415
    %v1438 = vpack.c.bf16 %v1418, %v1416
    %v1439 = vpack.c.bf16 %v1421, %v1419
    %v1440 = vpack.c.bf16 %v1422, %v1420
    %v1441 = vpack.c.bf16 %v1425, %v1423
    %v1442 = vpack.c.bf16 %v1426, %v1424
    %v1443 = vld [vmem:[%s4] sm:$0xf]
    %v1444 = vld [vmem:[%s4 + $0x4] sm:$0xf]
    %v1445 = vld [vmem:[%s4 + $0x8] sm:$0xf]
    %v1446 = vld [vmem:[%s4 + $0xc] sm:$0xf]
    %v1447 = vld [vmem:[%s4 + $0x10] sm:$0xf]
    %v1448 = vld [vmem:[%s4 + $0x14] sm:$0xf]
    %v1449 = vld [vmem:[%s4 + $0x18] sm:$0xf]
    %v1450 = vld [vmem:[%s4 + $0x1c] sm:$0xf]
    %v1451 = vld [vmem:[%s4 + $0x20] sm:$0xf]
    %v1452 = vld [vmem:[%s4 + $0x24] sm:$0xf]
    %v1453 = vld [vmem:[%s4 + $0x28] sm:$0xf]
    %v1454 = vld [vmem:[%s4 + $0x2c] sm:$0xf]
    %v1455 = vld [vmem:[%s4 + $0x30] sm:$0xf]
    %v1456 = vld [vmem:[%s4 + $0x34] sm:$0xf]
    %v1457 = vld [vmem:[%s4 + $0x38] sm:$0xf]
    %v1458 = vld [vmem:[%s4 + $0x3c] sm:$0xf]
    %v1459 = vld [vmem:[%s4 + $0x40] sm:$0xf]
    %v1460 = vld [vmem:[%s4 + $0x44] sm:$0xf]
    %v1461 = vld [vmem:[%s4 + $0x48] sm:$0xf]
    %v1462 = vld [vmem:[%s4 + $0x4c] sm:$0xf]
    %v1463 = vld [vmem:[%s4 + $0x50] sm:$0xf]
    %v1464 = vld [vmem:[%s4 + $0x54] sm:$0xf]
    %v1465 = vld [vmem:[%s4 + $0x58] sm:$0xf]
    %v1466 = vld [vmem:[%s4 + $0x5c] sm:$0xf]
    %v1467 = vld [vmem:[%s4 + $0x60] sm:$0xf]
    %v1468 = vld [vmem:[%s4 + $0x64] sm:$0xf]
    %v1469 = vld [vmem:[%s4 + $0x68] sm:$0xf]
    %v1470 = vld [vmem:[%s4 + $0x6c] sm:$0xf]
    %v1471 = vld [vmem:[%s4 + $0x70] sm:$0xf]
    %v1472 = vld [vmem:[%s4 + $0x74] sm:$0xf]
    %v1473 = vld [vmem:[%s4 + $0x78] sm:$0xf]
    %v1474 = vld [vmem:[%s4 + $0x7c] sm:$0xf]
    %v1507 = vunpack.c.l.b16 %v1443
    %v1508 = vunpack.c.l.b16 %v1444
    %v1509 = vunpack.c.l.b16 %v1445
    %v1510 = vunpack.c.l.b16 %v1446
    %v1511 = vunpack.c.l.b16 %v1447
    %v1512 = vunpack.c.l.b16 %v1448
    %v1513 = vunpack.c.l.b16 %v1449
    %v1514 = vunpack.c.l.b16 %v1450
    %v1515 = vunpack.c.l.b16 %v1451
    %v1516 = vunpack.c.l.b16 %v1452
    %v1517 = vunpack.c.l.b16 %v1453
    %v1518 = vunpack.c.l.b16 %v1454
    %v1519 = vunpack.c.l.b16 %v1455
    %v1520 = vunpack.c.l.b16 %v1456
    %v1521 = vunpack.c.l.b16 %v1457
    %v1522 = vunpack.c.l.b16 %v1458
    %v1523 = vunpack.c.l.b16 %v1459
    %v1524 = vunpack.c.l.b16 %v1460
    %v1525 = vunpack.c.l.b16 %v1461
    %v1526 = vunpack.c.l.b16 %v1462
    %v1527 = vunpack.c.l.b16 %v1463
    %v1528 = vunpack.c.l.b16 %v1464
    %v1529 = vunpack.c.l.b16 %v1465
    %v1530 = vunpack.c.l.b16 %v1466
    %v1531 = vunpack.c.l.b16 %v1467
    %v1532 = vunpack.c.l.b16 %v1468
    %v1533 = vunpack.c.l.b16 %v1469
    %v1534 = vunpack.c.l.b16 %v1470
    %v1535 = vunpack.c.l.b16 %v1471
    %v1536 = vunpack.c.l.b16 %v1472
    %v1537 = vunpack.c.l.b16 %v1473
    %v1538 = vunpack.c.l.b16 %v1474
    %v1539 = vpack.c.b16 %v1508, %v1507
    %v1540 = vpack.c.b16 %v1510, %v1509
    %v1541 = vpack.c.b16 %v1512, %v1511
    %v1542 = vpack.c.b16 %v1514, %v1513
    %v1543 = vpack.c.b16 %v1516, %v1515
    %v1544 = vpack.c.b16 %v1518, %v1517
    %v1545 = vpack.c.b16 %v1520, %v1519
    %v1546 = vpack.c.b16 %v1522, %v1521
    %v1547 = vpack.c.b16 %v1524, %v1523
    %v1548 = vpack.c.b16 %v1526, %v1525
    %v1549 = vpack.c.b16 %v1528, %v1527
    %v1550 = vpack.c.b16 %v1530, %v1529
    %v1551 = vpack.c.b16 %v1532, %v1531
    %v1552 = vpack.c.b16 %v1534, %v1533
    %v1553 = vpack.c.b16 %v1536, %v1535
    %v1554 = vpack.c.b16 %v1538, %v1537
    %1571 = vmatprep.subr.bf16.mxu0 0
    %1572 = vmatpush1.bf16.msra.mxu0 %v1546
    %1573 = vmatprep.subr.bf16.mxu0 0
    %1574 = vmatpush1.bf16.msra.mxu0 %v1545
    %1575 = vmatprep.subr.bf16.mxu0 0
    %1576 = vmatpush1.bf16.msra.mxu0 %v1544
    %1577 = vmatprep.subr.bf16.mxu0 0
    %1578 = vmatpush1.bf16.msra.mxu0 %v1543
    %1579 = vmatprep.subr.bf16.mxu0 0
    %1580 = vmatpush1.bf16.msra.mxu0 %v1542
    %1581 = vmatprep.subr.bf16.mxu0 0
    %1582 = vmatpush1.bf16.msra.mxu0 %v1541
    %1583 = vmatprep.subr.bf16.mxu0 0
    %1584 = vmatpush1.bf16.msra.mxu0 %v1540
    %1585 = vmatprep.subr.bf16.mxu0 0
    %1586 = vmatpush1.bf16.msra.mxu0 %v1539
    %1587 = vmatprep.subr.bf16.mxu0 0
    %1588 = vmatpush2.bf16.msra.mxu0 %v1554
    %1589 = vmatprep.subr.bf16.mxu0 0
    %1590 = vmatpush2.bf16.msra.mxu0 %v1553
    %1591 = vmatprep.subr.bf16.mxu0 0
    %1592 = vmatpush2.bf16.msra.mxu0 %v1552
    %1593 = vmatprep.subr.bf16.mxu0 0
    %1594 = vmatpush2.bf16.msra.mxu0 %v1551
    %1595 = vmatprep.subr.bf16.mxu0 0
    %1596 = vmatpush2.bf16.msra.mxu0 %v1550
    %1597 = vmatprep.subr.bf16.mxu0 0
    %1598 = vmatpush2.bf16.msra.mxu0 %v1549
    %1599 = vmatprep.subr.bf16.mxu0 0
    %1600 = vmatpush2.bf16.msra.mxu0 %v1548
    %1601 = vmatprep.subr.bf16.mxu0 0
    %1602 = vmatpush2.bf16.msra.mxu0 %v1547
    %1603 = vmatprep.mubr.bf16.mxu0 %v1428
    %1604 = vmatmul.mubr.bf16.gmra.mxu0 %v1427
    %v1605 = vpop.f32.mrf.mxu0
    %v1606 = vadd.f32 0.0, %v1605
    %v1607 = vpop.f32.mrf.mxu0
    %v1608 = vpop.f32.mrf.mxu0
    %v1609 = vadd.f32 0.0, %v1608
    %v1610 = vpop.f32.mrf.mxu0
    %1611 = vmatprep.mubr.bf16.mxu0 %v1430
    %1612 = vmatmul.mubr.bf16.gmra.mxu0 %v1429
    %v1613 = vpop.f32.mrf.mxu0
    %v1614 = vadd.f32 0.0, %v1613
    %v1615 = vpop.f32.mrf.mxu0
    %v1616 = vpop.f32.mrf.mxu0
    %v1617 = vadd.f32 0.0, %v1616
    %v1618 = vpop.f32.mrf.mxu0
    %1619 = vmatprep.mubr.bf16.mxu0 %v1432
    %1620 = vmatmul.mubr.bf16.gmra.mxu0 %v1431
    %v1621 = vpop.f32.mrf.mxu0
    %v1622 = vadd.f32 0.0, %v1621
    %v1623 = vpop.f32.mrf.mxu0
    %v1624 = vpop.f32.mrf.mxu0
    %v1625 = vadd.f32 0.0, %v1624
    %v1626 = vpop.f32.mrf.mxu0
    %1627 = vmatprep.mubr.bf16.mxu0 %v1434
    %1628 = vmatmul.mubr.bf16.gmra.mxu0 %v1433
    %v1629 = vpop.f32.mrf.mxu0
    %v1630 = vadd.f32 0.0, %v1629
    %v1631 = vpop.f32.mrf.mxu0
    %v1632 = vpop.f32.mrf.mxu0
    %v1633 = vadd.f32 0.0, %v1632
    %v1634 = vpop.f32.mrf.mxu0
    %1635 = vmatprep.mubr.bf16.mxu0 %v1436
    %1636 = vmatmul.mubr.bf16.gmra.mxu0 %v1435
    %v1637 = vpop.f32.mrf.mxu0
    %v1638 = vadd.f32 0.0, %v1637
    %v1639 = vpop.f32.mrf.mxu0
    %v1640 = vpop.f32.mrf.mxu0
    %v1641 = vadd.f32 0.0, %v1640
    %v1642 = vpop.f32.mrf.mxu0
    %1643 = vmatprep.mubr.bf16.mxu0 %v1438
    %1644 = vmatmul.mubr.bf16.gmra.mxu0 %v1437
    %v1645 = vpop.f32.mrf.mxu0
    %v1646 = vadd.f32 0.0, %v1645
    %v1647 = vpop.f32.mrf.mxu0
    %v1648 = vpop.f32.mrf.mxu0
    %v1649 = vadd.f32 0.0, %v1648
    %v1650 = vpop.f32.mrf.mxu0
    %1651 = vmatprep.mubr.bf16.mxu0 %v1440
    %1652 = vmatmul.mubr.bf16.gmra.mxu0 %v1439
    %v1653 = vpop.f32.mrf.mxu0
    %v1654 = vadd.f32 0.0, %v1653
    %v1655 = vpop.f32.mrf.mxu0
    %v1656 = vpop.f32.mrf.mxu0
    %v1657 = vadd.f32 0.0, %v1656
    %v1658 = vpop.f32.mrf.mxu0
    %1659 = vmatprep.mubr.bf16.mxu0 %v1442
    %1660 = vmatmul.mubr.bf16.gmra.mxu0 %v1441
    %v1661 = vpop.f32.mrf.mxu0
    %v1662 = vadd.f32 0.0, %v1661
    %v1663 = vpop.f32.mrf.mxu0
    %v1664 = vpop.f32.mrf.mxu0
    %v1665 = vadd.f32 0.0, %v1664
    %v1666 = vpop.f32.mrf.mxu0
    %1667 = vdwg.mxu0
    %vm1668 = vcmask 64512
    %1669 = vst.msk [vmem:[%s5] sm:$0xff] %vm1668, %v1606
    %1670 = vst.msk [vmem:[%s5 + $0x8] sm:$0xff] %vm1668, %v1609
    %1671 = vst.msk [vmem:[%s5 + $0x10] sm:$0xff] %vm1668, %v1614
    %1672 = vst.msk [vmem:[%s5 + $0x18] sm:$0xff] %vm1668, %v1617
    %1673 = vst.msk [vmem:[%s5 + $0x20] sm:$0xff] %vm1668, %v1622
    %1674 = vst.msk [vmem:[%s5 + $0x28] sm:$0xff] %vm1668, %v1625
    %1675 = vst.msk [vmem:[%s5 + $0x30] sm:$0xff] %vm1668, %v1630
    %1676 = vst.msk [vmem:[%s5 + $0x38] sm:$0xff] %vm1668, %v1633
    %1677 = vst.msk [vmem:[%s5 + $0x40] sm:$0xff] %vm1668, %v1638
    %1678 = vst.msk [vmem:[%s5 + $0x48] sm:$0xff] %vm1668, %v1641
    %1679 = vst.msk [vmem:[%s5 + $0x50] sm:$0xff] %vm1668, %v1646
    %1680 = vst.msk [vmem:[%s5 + $0x58] sm:$0xff] %vm1668, %v1649
    %1681 = vst.msk [vmem:[%s5 + $0x60] sm:$0xff] %vm1668, %v1654
    %1682 = vst.msk [vmem:[%s5 + $0x68] sm:$0xff] %vm1668, %v1657
    %1683 = vst.msk [vmem:[%s5 + $0x70] sm:$0xff] %vm1668, %v1662
    %1684 = vst.msk [vmem:[%s5 + $0x78] sm:$0xff] %vm1668, %v1665
    // Predicated region
    $region26: #{tpu_custom_call.1} parent=1 // pred_check
      _
    $region27: #{tpu_custom_call.1} parent=1 // pred_check_branch
      %1686 = sbr.rel (0) target = $region29
    $region28: #{tpu_custom_call.1} parent=1 // pred_region
      _
    $region29: #{tpu_custom_call.1} parent=1 // pred_fallthru
      _
    // Predicated region
    $region30: #{tpu_custom_call.1} parent=1 // pred_check
      _
    $region31: #{tpu_custom_call.1} parent=1 // pred_check_branch
      %1688 = sbr.rel (0) target = $region33
    $region32: #{tpu_custom_call.1} parent=1 // pred_region
      _
    $region33: #{tpu_custom_call.1} parent=1 // pred_fallthru
      _
    %1689 = vsyncpa [#allocation3], 1

</llo_original>
